<compile_context>
chip_gen: v7x
topology: tpu7x:2x2x1
jax: 0.10.0
libtpu: 0.0.40
codegen_flags: <defaults>
</compile_context>

<pallas_src>
import functools

import jax
import jax.numpy as jnp
import numpy as np
from jax.experimental import pallas as pl
from jax.experimental.pallas import tpu as pltpu

KERNEL_SIZE = 7


def _vmem_capacity_bytes():
    try:
        info = pltpu.get_tpu_info()
        return int(getattr(info, "vmem_capacity_bytes", 128 * 1024 * 1024))
    except Exception:
        return 128 * 1024 * 1024


def _build_conv_matrices(conv_weight, C, H, W, K, PAD):
    """(2, HW, HW) f32: M[ci, src_flat, out_flat] = weight (pad-masked).

    Folds the conv weights, the zero-padding validity, and the channel-mean's
    1/C (into the avg map, ci=0).  Host-side, weight/HW-sized work only.
    """
    HW = H * W
    w = np.asarray(conv_weight, dtype=np.float32).reshape(2, K, K).copy()
    w[0] *= 1.0 / C                                    # fold mean's 1/C
    oi, oj = np.meshgrid(np.arange(H), np.arange(W), indexing="ij")
    out_idx = (oi * W + oj).reshape(-1)                # (HW,)
    mats = np.zeros((2, HW, HW), np.float32)
    for kh in range(K):
        dh = kh - PAD
        si = oi + dh
        for kw in range(K):
            dw = kw - PAD
            sj = oj + dw
            valid = ((si >= 0) & (si < H) & (sj >= 0) & (sj < W)).reshape(-1)
            src_idx = (np.clip(si, 0, H - 1) * W + np.clip(sj, 0, W - 1)).reshape(-1)
            s_v = src_idx[valid]
            o_v = out_idx[valid]
            for ci in range(2):
                mats[ci, s_v, o_v] += w[ci, kh, kw]
    return jnp.asarray(mats)


def _spatial_attention_kernel(cm_ref, x_ref, o_ref, *, C, HW):
    # cm_ref: VMEM (2, HW, HW) f32 — conv matrices (weights * pad masks; 1/C
    #         folded into map 0).  Resident across grid steps.
    # x_ref:  VMEM (BN, C*HW)    — batch tile; lane axis = channel-major space.
    # o_ref:  VMEM (BN, HW)      — sigmoid(conv) output tile (lane-dense).

    # Channel sum + max, accumulated with two interleaved partials each so the
    # VALU dependency chain is halved and rounding matches a tree reduction.
    s_parts = [None, None]
    m_parts = [None, None]
    for c in range(C):
        xc = x_ref[:, pl.ds(c * HW, HW)].astype(jnp.float32)   # aligned lane slice
        k = c & 1
        s_parts[k] = xc if s_parts[k] is None else s_parts[k] + xc
        m_parts[k] = xc if m_parts[k] is None else jnp.maximum(m_parts[k], xc)
    s = s_parts[0] if s_parts[1] is None else s_parts[0] + s_parts[1]
    m = m_parts[0] if m_parts[1] is None else jnp.maximum(m_parts[0], m_parts[1])

    # 7x7 "same" conv (2->1 channels, no bias) as two MXU matmuls over the
    # flattened spatial axis.  HIGHEST precision keeps f32-grade accuracy.
    conv = jnp.dot(s, cm_ref[0], preferred_element_type=jnp.float32,
                   precision=jax.lax.Precision.HIGHEST)
    conv = conv + jnp.dot(m, cm_ref[1], preferred_element_type=jnp.float32,
                          precision=jax.lax.Precision.HIGHEST)

    o_ref[...] = jax.nn.sigmoid(conv).astype(o_ref.dtype)


def spatial_attention(x, conv_weight, *, kernel_size=KERNEL_SIZE, block_n=None):
    """x: (N, C, H, W); conv_weight: (1, 2, K, K) OIHW. Returns (N, 1, H, W)."""
    assert kernel_size in (3, 7), "kernel size must be 3 or 7"
    K = kernel_size
    PAD = 3 if K == 7 else 1
    N, C, H, W = x.shape
    HW = H * W
    assert conv_weight.shape == (1, 2, K, K)

    # ---- host-side prep (weight/HW-sized, not data-sized) ------------------
    conv_mats = _build_conv_matrices(conv_weight, C, H, W, K, PAD)
    conv_mat_bytes = int(conv_mats.size) * 4
    # TODO(synk): for HW large enough that the (2, HW, HW) matrix won't fit
    # VMEM (HW >~ 2048), fall back to a spatially-tiled / rolled conv path.

    x_flat = x.reshape(N, C * HW)                       # lane-dense 2D input
    itemsize = x.dtype.itemsize

    # ---- generation-aware batch tiling -------------------------------------
    vmem_bytes = _vmem_capacity_bytes()
    small_vmem = vmem_bytes <= 64 * 1024 * 1024         # v7x-class: 64 MiB, 2 TCs

    if block_n is None:
        per_batch_in = C * HW * itemsize
        in_block_cap = (4 if small_vmem else 8) * 1024 * 1024
        block_n = max(1, min(N, in_block_cap // max(1, per_batch_in)))
        if small_vmem and N >= 2:
            # keep >=2 grid steps so both v7x TensorCores get work
            block_n = min(block_n, pl.cdiv(N, 2))
        if block_n < N:
            # sublane-friendly tile height when not covering the full batch
            block_n = min(N, max(8, (block_n // 8) * 8))
    grid = (pl.cdiv(N, block_n),)

    est_vmem = (2 * block_n * C * HW * itemsize          # double-buffered input
                + 2 * block_n * HW * itemsize            # double-buffered output
                + conv_mat_bytes                         # resident conv matrices
                + 12 * block_n * HW * 4)                 # f32 intermediates
    vmem_limit = int(min(0.9 * vmem_bytes, max(2 * est_vmem, 32 * 1024 * 1024)))

    cost = pl.CostEstimate(
        flops=int(N * HW * (2 * C + 4 * HW)),            # channel reduce + 2 matmuls
        transcendentals=int(N * HW),                     # sigmoid
        bytes_accessed=int(N * C * HW * itemsize + N * HW * itemsize + conv_mat_bytes),
    )

    kernel = functools.partial(_spatial_attention_kernel, C=C, HW=HW)

    out_flat = pl.pallas_call(
        kernel,
        out_shape=jax.ShapeDtypeStruct((N, HW), x.dtype),
        grid=grid,
        in_specs=[
            pl.BlockSpec((2, HW, HW), lambda n: (0, 0, 0)),     # conv matrices (resident)
            pl.BlockSpec((block_n, C * HW), lambda n: (n, 0)),  # batch tile
        ],
        out_specs=pl.BlockSpec((block_n, HW), lambda n: (n, 0)),
        compiler_params=pltpu.CompilerParams(
            dimension_semantics=("parallel",),
            vmem_limit_bytes=vmem_limit,
        ),
        cost_estimate=cost,
    )(conv_mats, x_flat)

    return out_flat.reshape(N, 1, H, W)


def _reference(x, conv_weight, pad=3):
    avg_out = jnp.mean(x, axis=1, keepdims=True)
    max_out = jnp.max(x, axis=1, keepdims=True)
    cat = jnp.concatenate([avg_out, max_out], axis=1)
    conv = jax.lax.conv_general_dilated(
        cat, conv_weight, window_strides=(1, 1),
        padding=[(pad, pad), (pad, pad)],
        dimension_numbers=("NCHW", "OIHW", "NCHW"),
        precision=jax.lax.Precision.HIGHEST,
    )
    return jax.nn.sigmoid(conv)


if __name__ == "__main__":
    key = jax.random.PRNGKey(0)
    kx, kw = jax.random.split(key)

    N, C, H, W = 2, 4, 16, 16
    x = jax.random.normal(kx, (N, C, H, W), dtype=jnp.float32)

    # Deterministic init mimicking PyTorch's default kaiming-uniform bound:
    # bound = 1/sqrt(fan_in), fan_in = 2 * 7 * 7.
    fan_in = 2 * KERNEL_SIZE * KERNEL_SIZE
    bound = 1.0 / np.sqrt(fan_in)
    conv_weight = jax.random.uniform(
        kw, (1, 2, KERNEL_SIZE, KERNEL_SIZE), dtype=jnp.float32,
        minval=-bound, maxval=bound,
    )

    out = jax.block_until_ready(spatial_attention(x, conv_weight))
    ref = jax.block_until_ready(_reference(x, conv_weight))

    assert out.shape == (N, 1, H, W), out.shape
    np.testing.assert_allclose(np.asarray(out), np.asarray(ref), atol=2e-5, rtol=2e-5)

    print("KERNEL_OK")
</pallas_src>

<mosaic_0001>
module attributes {stable_mosaic.version = 11 : i64} {
  func.func @_spatial_attention_kernel(%arg0: i32, %arg1: memref<2x256x256xf32, #tpu.memory_space<vmem>>, %arg2: memref<2x1024xf32, #tpu.memory_space<vmem>>, %arg3: memref<2x256xf32, #tpu.memory_space<vmem>>) attributes {dimension_semantics = [#tpu.dimension_semantics<parallel>], iteration_bounds = array<i64: 1>, scalar_prefetch = 0 : i64, scratch_operands = 0 : i64, tpu.core_type = #tpu.core_type<tc>, window_params = [{pipeline_mode = #tpu.pipeline_mode<synchronous>, transform_indices = @transform_0, window_bounds = array<i64: 2, 256, 256>}, {transform_indices = @transform_1, window_bounds = array<i64: 2, 1024>}, {transform_indices = @transform_2, window_bounds = array<i64: 2, 256>}]} {
    %c0 = arith.constant 0 : index
    %c0_0 = arith.constant 0 : index
    %0 = vector.load %arg2[%c0, %c0_0] : memref<2x1024xf32, #tpu.memory_space<vmem>>, vector<2x256xf32>
    %c0_1 = arith.constant 0 : index
    %c256 = arith.constant 256 : index
    %1 = vector.load %arg2[%c0_1, %c256] : memref<2x1024xf32, #tpu.memory_space<vmem>>, vector<2x256xf32>
    %c0_2 = arith.constant 0 : index
    %c512 = arith.constant 512 : index
    %2 = vector.load %arg2[%c0_2, %c512] : memref<2x1024xf32, #tpu.memory_space<vmem>>, vector<2x256xf32>
    %3 = arith.addf %0, %2 : vector<2x256xf32>
    %4 = arith.maximumf %0, %2 : vector<2x256xf32>
    %c0_3 = arith.constant 0 : index
    %c768 = arith.constant 768 : index
    %5 = vector.load %arg2[%c0_3, %c768] : memref<2x1024xf32, #tpu.memory_space<vmem>>, vector<2x256xf32>
    %6 = arith.addf %1, %5 : vector<2x256xf32>
    %7 = arith.maximumf %1, %5 : vector<2x256xf32>
    %8 = arith.addf %3, %6 : vector<2x256xf32>
    %9 = arith.maximumf %4, %7 : vector<2x256xf32>
    %c0_4 = arith.constant 0 : index
    %c0_5 = arith.constant 0 : index
    %c0_6 = arith.constant 0 : index
    %10 = vector.load %arg1[%c0_4, %c0_5, %c0_6] : memref<2x256x256xf32, #tpu.memory_space<vmem>>, vector<1x256x256xf32>
    %11 = vector.shape_cast %10 : vector<1x256x256xf32> to vector<256x256xf32>
    %cst = arith.constant dense<0.000000e+00> : vector<2x256xf32>
    %12 = tpu.matmul %8, %11, %cst {dimension_numbers = #tpu.dot_dimension_numbers<[1], [0], [0], [1], [0, 0, 1, 1], [], []>, precision = #tpu.contract_precision<fp32>} : vector<2x256xf32>, vector<256x256xf32>, vector<2x256xf32> -> vector<2x256xf32>
    %c1 = arith.constant 1 : index
    %c0_7 = arith.constant 0 : index
    %c0_8 = arith.constant 0 : index
    %13 = vector.load %arg1[%c1, %c0_7, %c0_8] : memref<2x256x256xf32, #tpu.memory_space<vmem>>, vector<1x256x256xf32>
    %14 = vector.shape_cast %13 : vector<1x256x256xf32> to vector<256x256xf32>
    %cst_9 = arith.constant dense<0.000000e+00> : vector<2x256xf32>
    %15 = tpu.matmul %9, %14, %cst_9 {dimension_numbers = #tpu.dot_dimension_numbers<[1], [0], [0], [1], [0, 0, 1, 1], [], []>, precision = #tpu.contract_precision<fp32>} : vector<2x256xf32>, vector<256x256xf32>, vector<2x256xf32> -> vector<2x256xf32>
    %16 = arith.addf %12, %15 : vector<2x256xf32>
    %17 = arith.negf %16 : vector<2x256xf32>
    %18 = math.exp %17 : vector<2x256xf32>
    %cst_10 = arith.constant 1.000000e+00 : f32
    %19 = vector.broadcast %cst_10 : f32 to vector<2x256xf32>
    %20 = arith.addf %19, %18 : vector<2x256xf32>
    %21 = arith.divf %19, %20 : vector<2x256xf32>
    %c0_11 = arith.constant 0 : index
    %c0_12 = arith.constant 0 : index
    %22 = vector.load %arg3[%c0_11, %c0_12] : memref<2x256xf32, #tpu.memory_space<vmem>>, vector<2x256xf32>
    tpu.vector_store %arg3[%c0_11, %c0_12], %21 {strides = array<i32>} : memref<2x256xf32, #tpu.memory_space<vmem>>, vector<2x256xf32>,
    return
  }
  func.func @transform_0(%arg0: i32) -> (i32, i32, i32) {
    %c0_i32 = arith.constant 0 : i32
    %c0_i32_0 = arith.constant 0 : i32
    %c0_i32_1 = arith.constant 0 : i32
    %c0_i32_2 = arith.constant 0 : i32
    return %c0_i32, %c0_i32_0, %c0_i32_1 : i32, i32, i32
  }
  func.func @transform_1(%arg0: i32) -> (i32, i32) {
    %c0_i32 = arith.constant 0 : i32
    %c0_i32_0 = arith.constant 0 : i32
    return %arg0, %c0_i32 : i32, i32
  }
  func.func @transform_2(%arg0: i32) -> (i32, i32) {
    %c0_i32 = arith.constant 0 : i32
    %c0_i32_0 = arith.constant 0 : i32
    return %arg0, %c0_i32 : i32, i32
  }
}

</mosaic_0001>

<llo_original>
// kernel: tpu_custom_call.1
$region0: #{tpu_custom_call.1}
  #allocation0 [shape = 'u32[]', space=smem, size = 0x4, offset = 0x4, fixed_abs, tag = 'smem constant byte address 0x4 - core index']
  #allocation1 [shape = 'u32[144,128]{1,0:T(1,128)}', space=vmem, size = 0x12000, scoped, tag = 'internal scratch']
  %s0 = inlined_call_operand.hbm [shape: f32[2,256,256], index: 0, kind: input, shape index: {}]
  %s1 = inlined_call_operand.hbm [shape: f32[2,1024], index: 1, kind: input, shape index: {}]
  %s2 = inlined_call_operand.hbm [shape: f32[2,256], index: 2, kind: output, shape index: {}]
  %s3 = sld [smem:[#allocation0]]
  $region26: #{tpu_custom_call.1} parent=0
    _
  %s5 = ssub.s32 1, %s3
  %s6 = scalar_select 0, %s5, %s3
  $region1: #{tpu_custom_call.1} parent=0
    #allocation2 [shape = 'u8[524288]{0}', space=vmem, size = 0x80000, scoped, tag = 'input window, operand 0, single buffered']
    #allocation3 [shape = 's32[1]{0}', space=sflag, size = 0x4, scoped, tag = 'scoped memory for tpu_custom_call.1']
    #allocation4 [shape = 's32[1]{0}', space=sflag, size = 0x4, scoped, tag = 'scoped memory for tpu_custom_call.1']
    #allocation5 [shape = 'u8[8192]{0}', space=vmem, size = 0x2000, scoped, tag = 'input window, operand 1, single buffered']
    #allocation6 [shape = 's32[1]{0}', space=sflag, size = 0x4, scoped, tag = 'scoped memory for tpu_custom_call.1']
    #allocation7 [shape = 'u8[2048]{0}', space=vmem, size = 0x800, scoped, tag = 'output window, operand 0, single buffered']
    %7 = vsyncpa [#allocation3], 0
    %8 = vsyncpa [#allocation6], 0
    %9 = vsyncpa [#allocation4], 0
    // Predicated region
    $region2: #{tpu_custom_call.1} parent=1 // pred_check
      _
    $region3: #{tpu_custom_call.1} parent=1 // pred_check_branch
      %11 = sbr.rel (0) target = $region5
    $region4: #{tpu_custom_call.1} parent=1 // pred_region
      %s13 = ssub.s32 16384, 16384
      %14 = vsyncadd [#allocation3], %s13
      %s15 = sshll.u32 [#allocation2], 4
      %s16 = int_to_ptr.vmem [resolvable:$true] %s15
      %21 = dma.hbm_to_vmem [thread:$0]  %s0, 16384, %s16, [#allocation3], 256, 256, 16
    $region5: #{tpu_custom_call.1} parent=1 // pred_fallthru
      _
    // Predicated region
    $region6: #{tpu_custom_call.1} parent=1 // pred_check
      _
    $region7: #{tpu_custom_call.1} parent=1 // pred_check_branch
      %23 = sbr.rel (0) target = $region9
    $region8: #{tpu_custom_call.1} parent=1 // pred_region
      %s25 = ssub.s32 256, 256
      %26 = vsyncadd [#allocation6], %s25
      %s28 = sshll.u32 [#allocation5], 4
      %s29 = int_to_ptr.vmem [resolvable:$true] %s28
      %31 = dma.hbm_to_vmem [thread:$0]  %s1, 256, %s29, [#allocation6]
    $region9: #{tpu_custom_call.1} parent=1 // pred_fallthru
      _
    // Predicated region
    $region10: #{tpu_custom_call.1} parent=1 // pred_check
      _
    $region11: #{tpu_custom_call.1} parent=1 // pred_check_branch
      %33 = sbr.rel (0) target = $region13
    $region12: #{tpu_custom_call.1} parent=1 // pred_region
      %34 = dma.done [#allocation3], 16384
    $region13: #{tpu_custom_call.1} parent=1 // pred_fallthru
      _
    // Predicated region
    $region14: #{tpu_custom_call.1} parent=1 // pred_check
      _
    $region15: #{tpu_custom_call.1} parent=1 // pred_check_branch
      %36 = sbr.rel (0) target = $region17
    $region16: #{tpu_custom_call.1} parent=1 // pred_region
      %37 = dma.done [#allocation6], 256
    $region17: #{tpu_custom_call.1} parent=1 // pred_fallthru
      _
    %v38 = vld [vmem:[#allocation5] sm:$0xf]
    %v39 = vld [vmem:[#allocation5 + $0x4] sm:$0xf]
    %v40 = vld [vmem:[#allocation5 + $0x8] sm:$0xf]
    %v41 = vadd.f32 %v38, %v40
    %v42 = vmax.f32 %v38, %v40
    %v43 = vld [vmem:[#allocation5 + $0xc] sm:$0xf]
    %v44 = vadd.f32 %v39, %v43
    %v45 = vmax.f32 %v39, %v43
    %v46 = vadd.f32 %v41, %v44
    %v47 = vmax.f32 %v42, %v45
    %v48 = vld [vmem:[#allocation2] sm:$0xff]
    %v49 = vld [vmem:[#allocation2 + $0x8] sm:$0xff]
    %v50 = vld [vmem:[#allocation2 + $0x10] sm:$0xff]
    %v51 = vld [vmem:[#allocation2 + $0x18] sm:$0xff]
    %v52 = vld [vmem:[#allocation2 + $0x20] sm:$0xff]
    %v53 = vld [vmem:[#allocation2 + $0x28] sm:$0xff]
    %v54 = vld [vmem:[#allocation2 + $0x30] sm:$0xff]
    %v55 = vld [vmem:[#allocation2 + $0x38] sm:$0xff]
    %v56 = vld [vmem:[#allocation2 + $0x40] sm:$0xff]
    %v57 = vld [vmem:[#allocation2 + $0x48] sm:$0xff]
    %v58 = vld [vmem:[#allocation2 + $0x50] sm:$0xff]
    %v59 = vld [vmem:[#allocation2 + $0x58] sm:$0xff]
    %v60 = vld [vmem:[#allocation2 + $0x60] sm:$0xff]
    %v61 = vld [vmem:[#allocation2 + $0x68] sm:$0xff]
    %v62 = vld [vmem:[#allocation2 + $0x70] sm:$0xff]
    %v63 = vld [vmem:[#allocation2 + $0x78] sm:$0xff]
    %v64 = vld [vmem:[#allocation2 + $0x80] sm:$0xff]
    %v65 = vld [vmem:[#allocation2 + $0x88] sm:$0xff]
    %v66 = vld [vmem:[#allocation2 + $0x90] sm:$0xff]
    %v67 = vld [vmem:[#allocation2 + $0x98] sm:$0xff]
    %v68 = vld [vmem:[#allocation2 + $0xa0] sm:$0xff]
    %v69 = vld [vmem:[#allocation2 + $0xa8] sm:$0xff]
    %v70 = vld [vmem:[#allocation2 + $0xb0] sm:$0xff]
    %v71 = vld [vmem:[#allocation2 + $0xb8] sm:$0xff]
    %v72 = vld [vmem:[#allocation2 + $0xc0] sm:$0xff]
    %v73 = vld [vmem:[#allocation2 + $0xc8] sm:$0xff]
    %v74 = vld [vmem:[#allocation2 + $0xd0] sm:$0xff]
    %v75 = vld [vmem:[#allocation2 + $0xd8] sm:$0xff]
    %v76 = vld [vmem:[#allocation2 + $0xe0] sm:$0xff]
    %v77 = vld [vmem:[#allocation2 + $0xe8] sm:$0xff]
    %v78 = vld [vmem:[#allocation2 + $0xf0] sm:$0xff]
    %v79 = vld [vmem:[#allocation2 + $0xf8] sm:$0xff]
    %v80 = vld [vmem:[#allocation2 + $0x100] sm:$0xff]
    %v81 = vld [vmem:[#allocation2 + $0x108] sm:$0xff]
    %v82 = vld [vmem:[#allocation2 + $0x110] sm:$0xff]
    %v83 = vld [vmem:[#allocation2 + $0x118] sm:$0xff]
    %v84 = vld [vmem:[#allocation2 + $0x120] sm:$0xff]
    %v85 = vld [vmem:[#allocation2 + $0x128] sm:$0xff]
    %v86 = vld [vmem:[#allocation2 + $0x130] sm:$0xff]
    %v87 = vld [vmem:[#allocation2 + $0x138] sm:$0xff]
    %v88 = vld [vmem:[#allocation2 + $0x140] sm:$0xff]
    %v89 = vld [vmem:[#allocation2 + $0x148] sm:$0xff]
    %v90 = vld [vmem:[#allocation2 + $0x150] sm:$0xff]
    %v91 = vld [vmem:[#allocation2 + $0x158] sm:$0xff]
    %v92 = vld [vmem:[#allocation2 + $0x160] sm:$0xff]
    %v93 = vld [vmem:[#allocation2 + $0x168] sm:$0xff]
    %v94 = vld [vmem:[#allocation2 + $0x170] sm:$0xff]
    %v95 = vld [vmem:[#allocation2 + $0x178] sm:$0xff]
    %v96 = vld [vmem:[#allocation2 + $0x180] sm:$0xff]
    %v97 = vld [vmem:[#allocation2 + $0x188] sm:$0xff]
    %v98 = vld [vmem:[#allocation2 + $0x190] sm:$0xff]
    %v99 = vld [vmem:[#allocation2 + $0x198] sm:$0xff]
    %v100 = vld [vmem:[#allocation2 + $0x1a0] sm:$0xff]
    %v101 = vld [vmem:[#allocation2 + $0x1a8] sm:$0xff]
    %v102 = vld [vmem:[#allocation2 + $0x1b0] sm:$0xff]
    %v103 = vld [vmem:[#allocation2 + $0x1b8] sm:$0xff]
    %v104 = vld [vmem:[#allocation2 + $0x1c0] sm:$0xff]
    %v105 = vld [vmem:[#allocation2 + $0x1c8] sm:$0xff]
    %v106 = vld [vmem:[#allocation2 + $0x1d0] sm:$0xff]
    %v107 = vld [vmem:[#allocation2 + $0x1d8] sm:$0xff]
    %v108 = vld [vmem:[#allocation2 + $0x1e0] sm:$0xff]
    %v109 = vld [vmem:[#allocation2 + $0x1e8] sm:$0xff]
    %v110 = vld [vmem:[#allocation2 + $0x1f0] sm:$0xff]
    %v111 = vld [vmem:[#allocation2 + $0x1f8] sm:$0xff]
    %s112 = scalar_lea.vmem [#allocation2], 512
    %v113 = vld [vmem:[%s112] sm:$0xff]
    %v114 = vld [vmem:[%s112 + $0x8] sm:$0xff]
    %v115 = vld [vmem:[%s112 + $0x10] sm:$0xff]
    %v116 = vld [vmem:[%s112 + $0x18] sm:$0xff]
    %v117 = vld [vmem:[%s112 + $0x20] sm:$0xff]
    %v118 = vld [vmem:[%s112 + $0x28] sm:$0xff]
    %v119 = vld [vmem:[%s112 + $0x30] sm:$0xff]
    %v120 = vld [vmem:[%s112 + $0x38] sm:$0xff]
    %v121 = vld [vmem:[%s112 + $0x40] sm:$0xff]
    %v122 = vld [vmem:[%s112 + $0x48] sm:$0xff]
    %v123 = vld [vmem:[%s112 + $0x50] sm:$0xff]
    %v124 = vld [vmem:[%s112 + $0x58] sm:$0xff]
    %v125 = vld [vmem:[%s112 + $0x60] sm:$0xff]
    %v126 = vld [vmem:[%s112 + $0x68] sm:$0xff]
    %v127 = vld [vmem:[%s112 + $0x70] sm:$0xff]
    %v128 = vld [vmem:[%s112 + $0x78] sm:$0xff]
    %v129 = vld [vmem:[%s112 + $0x80] sm:$0xff]
    %v130 = vld [vmem:[%s112 + $0x88] sm:$0xff]
    %v131 = vld [vmem:[%s112 + $0x90] sm:$0xff]
    %v132 = vld [vmem:[%s112 + $0x98] sm:$0xff]
    %v133 = vld [vmem:[%s112 + $0xa0] sm:$0xff]
    %v134 = vld [vmem:[%s112 + $0xa8] sm:$0xff]
    %v135 = vld [vmem:[%s112 + $0xb0] sm:$0xff]
    %v136 = vld [vmem:[%s112 + $0xb8] sm:$0xff]
    %v137 = vld [vmem:[%s112 + $0xc0] sm:$0xff]
    %v138 = vld [vmem:[%s112 + $0xc8] sm:$0xff]
    %v139 = vld [vmem:[%s112 + $0xd0] sm:$0xff]
    %v140 = vld [vmem:[%s112 + $0xd8] sm:$0xff]
    %v141 = vld [vmem:[%s112 + $0xe0] sm:$0xff]
    %v142 = vld [vmem:[%s112 + $0xe8] sm:$0xff]
    %v143 = vld [vmem:[%s112 + $0xf0] sm:$0xff]
    %v144 = vld [vmem:[%s112 + $0xf8] sm:$0xff]
    %v145 = vld [vmem:[%s112 + $0x100] sm:$0xff]
    %v146 = vld [vmem:[%s112 + $0x108] sm:$0xff]
    %v147 = vld [vmem:[%s112 + $0x110] sm:$0xff]
    %v148 = vld [vmem:[%s112 + $0x118] sm:$0xff]
    %v149 = vld [vmem:[%s112 + $0x120] sm:$0xff]
    %v150 = vld [vmem:[%s112 + $0x128] sm:$0xff]
    %v151 = vld [vmem:[%s112 + $0x130] sm:$0xff]
    %v152 = vld [vmem:[%s112 + $0x138] sm:$0xff]
    %v153 = vld [vmem:[%s112 + $0x140] sm:$0xff]
    %v154 = vld [vmem:[%s112 + $0x148] sm:$0xff]
    %v155 = vld [vmem:[%s112 + $0x150] sm:$0xff]
    %v156 = vld [vmem:[%s112 + $0x158] sm:$0xff]
    %v157 = vld [vmem:[%s112 + $0x160] sm:$0xff]
    %v158 = vld [vmem:[%s112 + $0x168] sm:$0xff]
    %v159 = vld [vmem:[%s112 + $0x170] sm:$0xff]
    %v160 = vld [vmem:[%s112 + $0x178] sm:$0xff]
    %v161 = vld [vmem:[%s112 + $0x180] sm:$0xff]
    %v162 = vld [vmem:[%s112 + $0x188] sm:$0xff]
    %v163 = vld [vmem:[%s112 + $0x190] sm:$0xff]
    %v164 = vld [vmem:[%s112 + $0x198] sm:$0xff]
    %v165 = vld [vmem:[%s112 + $0x1a0] sm:$0xff]
    %v166 = vld [vmem:[%s112 + $0x1a8] sm:$0xff]
    %v167 = vld [vmem:[%s112 + $0x1b0] sm:$0xff]
    %v168 = vld [vmem:[%s112 + $0x1b8] sm:$0xff]
    %v169 = vld [vmem:[%s112 + $0x1c0] sm:$0xff]
    %v170 = vld [vmem:[%s112 + $0x1c8] sm:$0xff]
    %v171 = vld [vmem:[%s112 + $0x1d0] sm:$0xff]
    %v172 = vld [vmem:[%s112 + $0x1d8] sm:$0xff]
    %v173 = vld [vmem:[%s112 + $0x1e0] sm:$0xff]
    %v174 = vld [vmem:[%s112 + $0x1e8] sm:$0xff]
    %v175 = vld [vmem:[%s112 + $0x1f0] sm:$0xff]
    %v176 = vld [vmem:[%s112 + $0x1f8] sm:$0xff]
    %v179 = vunpack.c.l.s4 1983009808
    %v180 = vunpack.c.0.s8 %v179
    %v181 = vlaneseq
    %v182 = vshrl.u32 %v181, 7
    %v183 = vsub.s32 %v180, %v182
    %v184 = vrot.slane %v47, %v183
    %v185 = vcombine.high %v184, %v184
    %v188 = vand.u32 %v114, 4294901760
    %189 = vmatprep.subr.mxu0 %v188
    %v190 = vand.u32 %v113, 4294901760
    %191 = vmatpush1.msra.mxu0 %v190
    %v192 = vand.u32 %v116, 4294901760
    %193 = vmatprep.subr.mxu0 %v192
    %v194 = vand.u32 %v115, 4294901760
    %195 = vmatpush1.msra.mxu0 %v194
    %v196 = vand.u32 %v118, 4294901760
    %197 = vmatprep.subr.mxu0 %v196
    %v198 = vand.u32 %v117, 4294901760
    %199 = vmatpush1.msra.mxu0 %v198
    %v200 = vand.u32 %v120, 4294901760
    %201 = vmatprep.subr.mxu0 %v200
    %v202 = vand.u32 %v119, 4294901760
    %203 = vmatpush1.msra.mxu0 %v202
    %v204 = vand.u32 %v122, 4294901760
    %205 = vmatprep.subr.mxu0 %v204
    %v206 = vand.u32 %v121, 4294901760
    %207 = vmatpush1.msra.mxu0 %v206
    %v208 = vand.u32 %v124, 4294901760
    %209 = vmatprep.subr.mxu0 %v208
    %v210 = vand.u32 %v123, 4294901760
    %211 = vmatpush1.msra.mxu0 %v210
    %v212 = vand.u32 %v126, 4294901760
    %213 = vmatprep.subr.mxu0 %v212
    %v214 = vand.u32 %v125, 4294901760
    %215 = vmatpush1.msra.mxu0 %v214
    %v216 = vand.u32 %v128, 4294901760
    %217 = vmatprep.subr.mxu0 %v216
    %v218 = vand.u32 %v127, 4294901760
    %219 = vmatpush1.msra.mxu0 %v218
    %v220 = vand.u32 %v130, 4294901760
    %221 = vmatprep.subr.mxu0 %v220
    %v222 = vand.u32 %v129, 4294901760
    %223 = vmatpush1.msra.mxu0 %v222
    %v224 = vand.u32 %v132, 4294901760
    %225 = vmatprep.subr.mxu0 %v224
    %v226 = vand.u32 %v131, 4294901760
    %227 = vmatpush1.msra.mxu0 %v226
    %v228 = vand.u32 %v134, 4294901760
    %229 = vmatprep.subr.mxu0 %v228
    %v230 = vand.u32 %v133, 4294901760
    %231 = vmatpush1.msra.mxu0 %v230
    %v232 = vand.u32 %v136, 4294901760
    %233 = vmatprep.subr.mxu0 %v232
    %v234 = vand.u32 %v135, 4294901760
    %235 = vmatpush1.msra.mxu0 %v234
    %v236 = vand.u32 %v138, 4294901760
    %237 = vmatprep.subr.mxu0 %v236
    %v238 = vand.u32 %v137, 4294901760
    %239 = vmatpush1.msra.mxu0 %v238
    %v240 = vand.u32 %v140, 4294901760
    %241 = vmatprep.subr.mxu0 %v240
    %v242 = vand.u32 %v139, 4294901760
    %243 = vmatpush1.msra.mxu0 %v242
    %v244 = vand.u32 %v142, 4294901760
    %245 = vmatprep.subr.mxu0 %v244
    %v246 = vand.u32 %v141, 4294901760
    %247 = vmatpush1.msra.mxu0 %v246
    %v248 = vand.u32 %v144, 4294901760
    %249 = vmatprep.subr.mxu0 %v248
    %v250 = vand.u32 %v143, 4294901760
    %251 = vmatpush1.msra.mxu0 %v250
    %v252 = vand.u32 %v146, 4294901760
    %253 = vmatprep.subr.mxu0 %v252
    %v254 = vand.u32 %v145, 4294901760
    %255 = vmatpush1.msra.mxu0 %v254
    %v256 = vand.u32 %v148, 4294901760
    %257 = vmatprep.subr.mxu0 %v256
    %v258 = vand.u32 %v147, 4294901760
    %259 = vmatpush1.msra.mxu0 %v258
    %v260 = vand.u32 %v150, 4294901760
    %261 = vmatprep.subr.mxu0 %v260
    %v262 = vand.u32 %v149, 4294901760
    %263 = vmatpush1.msra.mxu0 %v262
    %v264 = vand.u32 %v152, 4294901760
    %265 = vmatprep.subr.mxu0 %v264
    %v266 = vand.u32 %v151, 4294901760
    %267 = vmatpush1.msra.mxu0 %v266
    %v268 = vand.u32 %v154, 4294901760
    %269 = vmatprep.subr.mxu0 %v268
    %v270 = vand.u32 %v153, 4294901760
    %271 = vmatpush1.msra.mxu0 %v270
    %v272 = vand.u32 %v156, 4294901760
    %273 = vmatprep.subr.mxu0 %v272
    %v274 = vand.u32 %v155, 4294901760
    %275 = vmatpush1.msra.mxu0 %v274
    %v276 = vand.u32 %v158, 4294901760
    %277 = vmatprep.subr.mxu0 %v276
    %v278 = vand.u32 %v157, 4294901760
    %279 = vmatpush1.msra.mxu0 %v278
    %v280 = vand.u32 %v160, 4294901760
    %281 = vmatprep.subr.mxu0 %v280
    %v282 = vand.u32 %v159, 4294901760
    %283 = vmatpush1.msra.mxu0 %v282
    %v284 = vand.u32 %v162, 4294901760
    %285 = vmatprep.subr.mxu0 %v284
    %v286 = vand.u32 %v161, 4294901760
    %287 = vmatpush1.msra.mxu0 %v286
    %v288 = vand.u32 %v164, 4294901760
    %289 = vmatprep.subr.mxu0 %v288
    %v290 = vand.u32 %v163, 4294901760
    %291 = vmatpush1.msra.mxu0 %v290
    %v292 = vand.u32 %v166, 4294901760
    %293 = vmatprep.subr.mxu0 %v292
    %v294 = vand.u32 %v165, 4294901760
    %295 = vmatpush1.msra.mxu0 %v294
    %v296 = vand.u32 %v168, 4294901760
    %297 = vmatprep.subr.mxu0 %v296
    %v298 = vand.u32 %v167, 4294901760
    %299 = vmatpush1.msra.mxu0 %v298
    %v300 = vand.u32 %v170, 4294901760
    %301 = vmatprep.subr.mxu0 %v300
    %v302 = vand.u32 %v169, 4294901760
    %303 = vmatpush1.msra.mxu0 %v302
    %v304 = vand.u32 %v172, 4294901760
    %305 = vmatprep.subr.mxu0 %v304
    %v306 = vand.u32 %v171, 4294901760
    %307 = vmatpush1.msra.mxu0 %v306
    %v308 = vand.u32 %v174, 4294901760
    %309 = vmatprep.subr.mxu0 %v308
    %v310 = vand.u32 %v173, 4294901760
    %311 = vmatpush1.msra.mxu0 %v310
    %v312 = vand.u32 %v176, 4294901760
    %313 = vmatprep.subr.mxu0 %v312
    %v314 = vand.u32 %v175, 4294901760
    %315 = vmatpush1.msra.mxu0 %v314
    %v316 = vand.u32 %v185, 4294901760
    %v317 = vsub.f32 %v185, %v316
    %v318 = vand.u32 %v317, 4294901760
    %v319 = vsub.f32 %v317, %v318
    %v320 = vand.u32 %v319, 4294901760
    %321 = vmatprep.mubr.f32.mxu0 %v320
    %v322 = vand.u32 %v184, 4294901760
    %v323 = vsub.f32 %v184, %v322
    %v324 = vand.u32 %v323, 4294901760
    %v325 = vsub.f32 %v323, %v324
    %v326 = vand.u32 %v325, 4294901760
    %327 = vmatmul.mubr.f32.gmra.mrb[0].mxu0 %v326
    %v328 = vpop.f32.mrb[0].mxu0
    %v329 = vadd.f32 0.0, %v328
    %v330 = vpop.f32.mrb[0].mxu0
    %v331 = vadd.f32 0.0, %v330
    %332 = vdwg.mxu0
    %v333 = vand.u32 %v114, 4294901760
    %v334 = vsub.f32 %v114, %v333
    %v335 = vand.u32 %v334, 4294901760
    %v336 = vsub.f32 %v334, %v335
    %v337 = vand.u32 %v336, 4294901760
    %338 = vmatprep.subr.mxu0 %v337
    %v339 = vand.u32 %v113, 4294901760
    %v340 = vsub.f32 %v113, %v339
    %v341 = vand.u32 %v340, 4294901760
    %v342 = vsub.f32 %v340, %v341
    %v343 = vand.u32 %v342, 4294901760
    %344 = vmatpush1.msra.mxu0 %v343
    %v345 = vand.u32 %v116, 4294901760
    %v346 = vsub.f32 %v116, %v345
    %v347 = vand.u32 %v346, 4294901760
    %v348 = vsub.f32 %v346, %v347
    %v349 = vand.u32 %v348, 4294901760
    %350 = vmatprep.subr.mxu0 %v349
    %v351 = vand.u32 %v115, 4294901760
    %v352 = vsub.f32 %v115, %v351
    %v353 = vand.u32 %v352, 4294901760
    %v354 = vsub.f32 %v352, %v353
    %v355 = vand.u32 %v354, 4294901760
    %356 = vmatpush1.msra.mxu0 %v355
    %v357 = vand.u32 %v118, 4294901760
    %v358 = vsub.f32 %v118, %v357
    %v359 = vand.u32 %v358, 4294901760
    %v360 = vsub.f32 %v358, %v359
    %v361 = vand.u32 %v360, 4294901760
    %362 = vmatprep.subr.mxu0 %v361
    %v363 = vand.u32 %v117, 4294901760
    %v364 = vsub.f32 %v117, %v363
    %v365 = vand.u32 %v364, 4294901760
    %v366 = vsub.f32 %v364, %v365
    %v367 = vand.u32 %v366, 4294901760
    %368 = vmatpush1.msra.mxu0 %v367
    %v369 = vand.u32 %v120, 4294901760
    %v370 = vsub.f32 %v120, %v369
    %v371 = vand.u32 %v370, 4294901760
    %v372 = vsub.f32 %v370, %v371
    %v373 = vand.u32 %v372, 4294901760
    %374 = vmatprep.subr.mxu0 %v373
    %v375 = vand.u32 %v119, 4294901760
    %v376 = vsub.f32 %v119, %v375
    %v377 = vand.u32 %v376, 4294901760
    %v378 = vsub.f32 %v376, %v377
    %v379 = vand.u32 %v378, 4294901760
    %380 = vmatpush1.msra.mxu0 %v379
    %v381 = vand.u32 %v122, 4294901760
    %v382 = vsub.f32 %v122, %v381
    %v383 = vand.u32 %v382, 4294901760
    %v384 = vsub.f32 %v382, %v383
    %v385 = vand.u32 %v384, 4294901760
    %386 = vmatprep.subr.mxu0 %v385
    %v387 = vand.u32 %v121, 4294901760
    %v388 = vsub.f32 %v121, %v387
    %v389 = vand.u32 %v388, 4294901760
    %v390 = vsub.f32 %v388, %v389
    %v391 = vand.u32 %v390, 4294901760
    %392 = vmatpush1.msra.mxu0 %v391
    %v393 = vand.u32 %v124, 4294901760
    %v394 = vsub.f32 %v124, %v393
    %v395 = vand.u32 %v394, 4294901760
    %v396 = vsub.f32 %v394, %v395
    %v397 = vand.u32 %v396, 4294901760
    %398 = vmatprep.subr.mxu0 %v397
    %v399 = vand.u32 %v123, 4294901760
    %v400 = vsub.f32 %v123, %v399
    %v401 = vand.u32 %v400, 4294901760
    %v402 = vsub.f32 %v400, %v401
    %v403 = vand.u32 %v402, 4294901760
    %404 = vmatpush1.msra.mxu0 %v403
    %v405 = vand.u32 %v126, 4294901760
    %v406 = vsub.f32 %v126, %v405
    %v407 = vand.u32 %v406, 4294901760
    %v408 = vsub.f32 %v406, %v407
    %v409 = vand.u32 %v408, 4294901760
    %410 = vmatprep.subr.mxu0 %v409
    %v411 = vand.u32 %v125, 4294901760
    %v412 = vsub.f32 %v125, %v411
    %v413 = vand.u32 %v412, 4294901760
    %v414 = vsub.f32 %v412, %v413
    %v415 = vand.u32 %v414, 4294901760
    %416 = vmatpush1.msra.mxu0 %v415
    %v417 = vand.u32 %v128, 4294901760
    %v418 = vsub.f32 %v128, %v417
    %v419 = vand.u32 %v418, 4294901760
    %v420 = vsub.f32 %v418, %v419
    %v421 = vand.u32 %v420, 4294901760
    %422 = vmatprep.subr.mxu0 %v421
    %v423 = vand.u32 %v127, 4294901760
    %v424 = vsub.f32 %v127, %v423
    %v425 = vand.u32 %v424, 4294901760
    %v426 = vsub.f32 %v424, %v425
    %v427 = vand.u32 %v426, 4294901760
    %428 = vmatpush1.msra.mxu0 %v427
    %v429 = vand.u32 %v130, 4294901760
    %v430 = vsub.f32 %v130, %v429
    %v431 = vand.u32 %v430, 4294901760
    %v432 = vsub.f32 %v430, %v431
    %v433 = vand.u32 %v432, 4294901760
    %434 = vmatprep.subr.mxu0 %v433
    %v435 = vand.u32 %v129, 4294901760
    %v436 = vsub.f32 %v129, %v435
    %v437 = vand.u32 %v436, 4294901760
    %v438 = vsub.f32 %v436, %v437
    %v439 = vand.u32 %v438, 4294901760
    %440 = vmatpush1.msra.mxu0 %v439
    %v441 = vand.u32 %v132, 4294901760
    %v442 = vsub.f32 %v132, %v441
    %v443 = vand.u32 %v442, 4294901760
    %v444 = vsub.f32 %v442, %v443
    %v445 = vand.u32 %v444, 4294901760
    %446 = vmatprep.subr.mxu0 %v445
    %v447 = vand.u32 %v131, 4294901760
    %v448 = vsub.f32 %v131, %v447
    %v449 = vand.u32 %v448, 4294901760
    %v450 = vsub.f32 %v448, %v449
    %v451 = vand.u32 %v450, 4294901760
    %452 = vmatpush1.msra.mxu0 %v451
    %v453 = vand.u32 %v134, 4294901760
    %v454 = vsub.f32 %v134, %v453
    %v455 = vand.u32 %v454, 4294901760
    %v456 = vsub.f32 %v454, %v455
    %v457 = vand.u32 %v456, 4294901760
    %458 = vmatprep.subr.mxu0 %v457
    %v459 = vand.u32 %v133, 4294901760
    %v460 = vsub.f32 %v133, %v459
    %v461 = vand.u32 %v460, 4294901760
    %v462 = vsub.f32 %v460, %v461
    %v463 = vand.u32 %v462, 4294901760
    %464 = vmatpush1.msra.mxu0 %v463
    %v465 = vand.u32 %v136, 4294901760
    %v466 = vsub.f32 %v136, %v465
    %v467 = vand.u32 %v466, 4294901760
    %v468 = vsub.f32 %v466, %v467
    %v469 = vand.u32 %v468, 4294901760
    %470 = vmatprep.subr.mxu0 %v469
    %v471 = vand.u32 %v135, 4294901760
    %v472 = vsub.f32 %v135, %v471
    %v473 = vand.u32 %v472, 4294901760
    %v474 = vsub.f32 %v472, %v473
    %v475 = vand.u32 %v474, 4294901760
    %476 = vmatpush1.msra.mxu0 %v475
    %v477 = vand.u32 %v138, 4294901760
    %v478 = vsub.f32 %v138, %v477
    %v479 = vand.u32 %v478, 4294901760
    %v480 = vsub.f32 %v478, %v479
    %v481 = vand.u32 %v480, 4294901760
    %482 = vmatprep.subr.mxu0 %v481
    %v483 = vand.u32 %v137, 4294901760
    %v484 = vsub.f32 %v137, %v483
    %v485 = vand.u32 %v484, 4294901760
    %v486 = vsub.f32 %v484, %v485
    %v487 = vand.u32 %v486, 4294901760
    %488 = vmatpush1.msra.mxu0 %v487
    %v489 = vand.u32 %v140, 4294901760
    %v490 = vsub.f32 %v140, %v489
    %v491 = vand.u32 %v490, 4294901760
    %v492 = vsub.f32 %v490, %v491
    %v493 = vand.u32 %v492, 4294901760
    %494 = vmatprep.subr.mxu0 %v493
    %v495 = vand.u32 %v139, 4294901760
    %v496 = vsub.f32 %v139, %v495
    %v497 = vand.u32 %v496, 4294901760
    %v498 = vsub.f32 %v496, %v497
    %v499 = vand.u32 %v498, 4294901760
    %500 = vmatpush1.msra.mxu0 %v499
    %v501 = vand.u32 %v142, 4294901760
    %v502 = vsub.f32 %v142, %v501
    %v503 = vand.u32 %v502, 4294901760
    %v504 = vsub.f32 %v502, %v503
    %v505 = vand.u32 %v504, 4294901760
    %506 = vmatprep.subr.mxu0 %v505
    %v507 = vand.u32 %v141, 4294901760
    %v508 = vsub.f32 %v141, %v507
    %v509 = vand.u32 %v508, 4294901760
    %v510 = vsub.f32 %v508, %v509
    %v511 = vand.u32 %v510, 4294901760
    %512 = vmatpush1.msra.mxu0 %v511
    %v513 = vand.u32 %v144, 4294901760
    %v514 = vsub.f32 %v144, %v513
    %v515 = vand.u32 %v514, 4294901760
    %v516 = vsub.f32 %v514, %v515
    %v517 = vand.u32 %v516, 4294901760
    %518 = vmatprep.subr.mxu0 %v517
    %v519 = vand.u32 %v143, 4294901760
    %v520 = vsub.f32 %v143, %v519
    %v521 = vand.u32 %v520, 4294901760
    %v522 = vsub.f32 %v520, %v521
    %v523 = vand.u32 %v522, 4294901760
    %524 = vmatpush1.msra.mxu0 %v523
    %v525 = vand.u32 %v146, 4294901760
    %v526 = vsub.f32 %v146, %v525
    %v527 = vand.u32 %v526, 4294901760
    %v528 = vsub.f32 %v526, %v527
    %v529 = vand.u32 %v528, 4294901760
    %530 = vmatprep.subr.mxu0 %v529
    %v531 = vand.u32 %v145, 4294901760
    %v532 = vsub.f32 %v145, %v531
    %v533 = vand.u32 %v532, 4294901760
    %v534 = vsub.f32 %v532, %v533
    %v535 = vand.u32 %v534, 4294901760
    %536 = vmatpush1.msra.mxu0 %v535
    %v537 = vand.u32 %v148, 4294901760
    %v538 = vsub.f32 %v148, %v537
    %v539 = vand.u32 %v538, 4294901760
    %v540 = vsub.f32 %v538, %v539
    %v541 = vand.u32 %v540, 4294901760
    %542 = vmatprep.subr.mxu0 %v541
    %v543 = vand.u32 %v147, 4294901760
    %v544 = vsub.f32 %v147, %v543
    %v545 = vand.u32 %v544, 4294901760
    %v546 = vsub.f32 %v544, %v545
    %v547 = vand.u32 %v546, 4294901760
    %548 = vmatpush1.msra.mxu0 %v547
    %v549 = vand.u32 %v150, 4294901760
    %v550 = vsub.f32 %v150, %v549
    %v551 = vand.u32 %v550, 4294901760
    %v552 = vsub.f32 %v550, %v551
    %v553 = vand.u32 %v552, 4294901760
    %554 = vmatprep.subr.mxu0 %v553
    %v555 = vand.u32 %v149, 4294901760
    %v556 = vsub.f32 %v149, %v555
    %v557 = vand.u32 %v556, 4294901760
    %v558 = vsub.f32 %v556, %v557
    %v559 = vand.u32 %v558, 4294901760
    %560 = vmatpush1.msra.mxu0 %v559
    %v561 = vand.u32 %v152, 4294901760
    %v562 = vsub.f32 %v152, %v561
    %v563 = vand.u32 %v562, 4294901760
    %v564 = vsub.f32 %v562, %v563
    %v565 = vand.u32 %v564, 4294901760
    %566 = vmatprep.subr.mxu0 %v565
    %v567 = vand.u32 %v151, 4294901760
    %v568 = vsub.f32 %v151, %v567
    %v569 = vand.u32 %v568, 4294901760
    %v570 = vsub.f32 %v568, %v569
    %v571 = vand.u32 %v570, 4294901760
    %572 = vmatpush1.msra.mxu0 %v571
    %v573 = vand.u32 %v154, 4294901760
    %v574 = vsub.f32 %v154, %v573
    %v575 = vand.u32 %v574, 4294901760
    %v576 = vsub.f32 %v574, %v575
    %v577 = vand.u32 %v576, 4294901760
    %578 = vmatprep.subr.mxu0 %v577
    %v579 = vand.u32 %v153, 4294901760
    %v580 = vsub.f32 %v153, %v579
    %v581 = vand.u32 %v580, 4294901760
    %v582 = vsub.f32 %v580, %v581
    %v583 = vand.u32 %v582, 4294901760
    %584 = vmatpush1.msra.mxu0 %v583
    %v585 = vand.u32 %v156, 4294901760
    %v586 = vsub.f32 %v156, %v585
    %v587 = vand.u32 %v586, 4294901760
    %v588 = vsub.f32 %v586, %v587
    %v589 = vand.u32 %v588, 4294901760
    %590 = vmatprep.subr.mxu0 %v589
    %v591 = vand.u32 %v155, 4294901760
    %v592 = vsub.f32 %v155, %v591
    %v593 = vand.u32 %v592, 4294901760
    %v594 = vsub.f32 %v592, %v593
    %v595 = vand.u32 %v594, 4294901760
    %596 = vmatpush1.msra.mxu0 %v595
    %v597 = vand.u32 %v158, 4294901760
    %v598 = vsub.f32 %v158, %v597
    %v599 = vand.u32 %v598, 4294901760
    %v600 = vsub.f32 %v598, %v599
    %v601 = vand.u32 %v600, 4294901760
    %602 = vmatprep.subr.mxu0 %v601
    %v603 = vand.u32 %v157, 4294901760
    %v604 = vsub.f32 %v157, %v603
    %v605 = vand.u32 %v604, 4294901760
    %v606 = vsub.f32 %v604, %v605
    %v607 = vand.u32 %v606, 4294901760
    %608 = vmatpush1.msra.mxu0 %v607
    %v609 = vand.u32 %v160, 4294901760
    %v610 = vsub.f32 %v160, %v609
    %v611 = vand.u32 %v610, 4294901760
    %v612 = vsub.f32 %v610, %v611
    %v613 = vand.u32 %v612, 4294901760
    %614 = vmatprep.subr.mxu0 %v613
    %v615 = vand.u32 %v159, 4294901760
    %v616 = vsub.f32 %v159, %v615
    %v617 = vand.u32 %v616, 4294901760
    %v618 = vsub.f32 %v616, %v617
    %v619 = vand.u32 %v618, 4294901760
    %620 = vmatpush1.msra.mxu0 %v619
    %v621 = vand.u32 %v162, 4294901760
    %v622 = vsub.f32 %v162, %v621
    %v623 = vand.u32 %v622, 4294901760
    %v624 = vsub.f32 %v622, %v623
    %v625 = vand.u32 %v624, 4294901760
    %626 = vmatprep.subr.mxu0 %v625
    %v627 = vand.u32 %v161, 4294901760
    %v628 = vsub.f32 %v161, %v627
    %v629 = vand.u32 %v628, 4294901760
    %v630 = vsub.f32 %v628, %v629
    %v631 = vand.u32 %v630, 4294901760
    %632 = vmatpush1.msra.mxu0 %v631
    %v633 = vand.u32 %v164, 4294901760
    %v634 = vsub.f32 %v164, %v633
    %v635 = vand.u32 %v634, 4294901760
    %v636 = vsub.f32 %v634, %v635
    %v637 = vand.u32 %v636, 4294901760
    %638 = vmatprep.subr.mxu0 %v637
    %v639 = vand.u32 %v163, 4294901760
    %v640 = vsub.f32 %v163, %v639
    %v641 = vand.u32 %v640, 4294901760
    %v642 = vsub.f32 %v640, %v641
    %v643 = vand.u32 %v642, 4294901760
    %644 = vmatpush1.msra.mxu0 %v643
    %v645 = vand.u32 %v166, 4294901760
    %v646 = vsub.f32 %v166, %v645
    %v647 = vand.u32 %v646, 4294901760
    %v648 = vsub.f32 %v646, %v647
    %v649 = vand.u32 %v648, 4294901760
    %650 = vmatprep.subr.mxu0 %v649
    %v651 = vand.u32 %v165, 4294901760
    %v652 = vsub.f32 %v165, %v651
    %v653 = vand.u32 %v652, 4294901760
    %v654 = vsub.f32 %v652, %v653
    %v655 = vand.u32 %v654, 4294901760
    %656 = vmatpush1.msra.mxu0 %v655
    %v657 = vand.u32 %v168, 4294901760
    %v658 = vsub.f32 %v168, %v657
    %v659 = vand.u32 %v658, 4294901760
    %v660 = vsub.f32 %v658, %v659
    %v661 = vand.u32 %v660, 4294901760
    %662 = vmatprep.subr.mxu0 %v661
    %v663 = vand.u32 %v167, 4294901760
    %v664 = vsub.f32 %v167, %v663
    %v665 = vand.u32 %v664, 4294901760
    %v666 = vsub.f32 %v664, %v665
    %v667 = vand.u32 %v666, 4294901760
    %668 = vmatpush1.msra.mxu0 %v667
    %v669 = vand.u32 %v170, 4294901760
    %v670 = vsub.f32 %v170, %v669
    %v671 = vand.u32 %v670, 4294901760
    %v672 = vsub.f32 %v670, %v671
    %v673 = vand.u32 %v672, 4294901760
    %674 = vmatprep.subr.mxu0 %v673
    %v675 = vand.u32 %v169, 4294901760
    %v676 = vsub.f32 %v169, %v675
    %v677 = vand.u32 %v676, 4294901760
    %v678 = vsub.f32 %v676, %v677
    %v679 = vand.u32 %v678, 4294901760
    %680 = vmatpush1.msra.mxu0 %v679
    %v681 = vand.u32 %v172, 4294901760
    %v682 = vsub.f32 %v172, %v681
    %v683 = vand.u32 %v682, 4294901760
    %v684 = vsub.f32 %v682, %v683
    %v685 = vand.u32 %v684, 4294901760
    %686 = vmatprep.subr.mxu0 %v685
    %v687 = vand.u32 %v171, 4294901760
    %v688 = vsub.f32 %v171, %v687
    %v689 = vand.u32 %v688, 4294901760
    %v690 = vsub.f32 %v688, %v689
    %v691 = vand.u32 %v690, 4294901760
    %692 = vmatpush1.msra.mxu0 %v691
    %v693 = vand.u32 %v174, 4294901760
    %v694 = vsub.f32 %v174, %v693
    %v695 = vand.u32 %v694, 4294901760
    %v696 = vsub.f32 %v694, %v695
    %v697 = vand.u32 %v696, 4294901760
    %698 = vmatprep.subr.mxu0 %v697
    %v699 = vand.u32 %v173, 4294901760
    %v700 = vsub.f32 %v173, %v699
    %v701 = vand.u32 %v700, 4294901760
    %v702 = vsub.f32 %v700, %v701
    %v703 = vand.u32 %v702, 4294901760
    %704 = vmatpush1.msra.mxu0 %v703
    %v705 = vand.u32 %v176, 4294901760
    %v706 = vsub.f32 %v176, %v705
    %v707 = vand.u32 %v706, 4294901760
    %v708 = vsub.f32 %v706, %v707
    %v709 = vand.u32 %v708, 4294901760
    %710 = vmatprep.subr.mxu0 %v709
    %v711 = vand.u32 %v175, 4294901760
    %v712 = vsub.f32 %v175, %v711
    %v713 = vand.u32 %v712, 4294901760
    %v714 = vsub.f32 %v712, %v713
    %v715 = vand.u32 %v714, 4294901760
    %716 = vmatpush1.msra.mxu0 %v715
    %v717 = vand.u32 %v185, 4294901760
    %718 = vmatprep.mubr.f32.mxu0 %v717
    %v719 = vand.u32 %v184, 4294901760
    %720 = vmatmul.mubr.f32.gmra.mrb[0].mxu0 %v719
    %v721 = vpop.f32.mrb[0].mxu0
    %v722 = vadd.f32 %v329, %v721
    %v723 = vpop.f32.mrb[0].mxu0
    %v724 = vadd.f32 %v331, %v723
    %725 = vdwg.mxu0
    %v726 = vand.u32 %v114, 4294901760
    %v727 = vsub.f32 %v114, %v726
    %728 = vmatprep.subr.mxu0 %v727
    %v729 = vand.u32 %v113, 4294901760
    %v730 = vsub.f32 %v113, %v729
    %731 = vmatpush1.msra.mxu0 %v730
    %v732 = vand.u32 %v116, 4294901760
    %v733 = vsub.f32 %v116, %v732
    %734 = vmatprep.subr.mxu0 %v733
    %v735 = vand.u32 %v115, 4294901760
    %v736 = vsub.f32 %v115, %v735
    %737 = vmatpush1.msra.mxu0 %v736
    %v738 = vand.u32 %v118, 4294901760
    %v739 = vsub.f32 %v118, %v738
    %740 = vmatprep.subr.mxu0 %v739
    %v741 = vand.u32 %v117, 4294901760
    %v742 = vsub.f32 %v117, %v741
    %743 = vmatpush1.msra.mxu0 %v742
    %v744 = vand.u32 %v120, 4294901760
    %v745 = vsub.f32 %v120, %v744
    %746 = vmatprep.subr.mxu0 %v745
    %v747 = vand.u32 %v119, 4294901760
    %v748 = vsub.f32 %v119, %v747
    %749 = vmatpush1.msra.mxu0 %v748
    %v750 = vand.u32 %v122, 4294901760
    %v751 = vsub.f32 %v122, %v750
    %752 = vmatprep.subr.mxu0 %v751
    %v753 = vand.u32 %v121, 4294901760
    %v754 = vsub.f32 %v121, %v753
    %755 = vmatpush1.msra.mxu0 %v754
    %v756 = vand.u32 %v124, 4294901760
    %v757 = vsub.f32 %v124, %v756
    %758 = vmatprep.subr.mxu0 %v757
    %v759 = vand.u32 %v123, 4294901760
    %v760 = vsub.f32 %v123, %v759
    %761 = vmatpush1.msra.mxu0 %v760
    %v762 = vand.u32 %v126, 4294901760
    %v763 = vsub.f32 %v126, %v762
    %764 = vmatprep.subr.mxu0 %v763
    %v765 = vand.u32 %v125, 4294901760
    %v766 = vsub.f32 %v125, %v765
    %767 = vmatpush1.msra.mxu0 %v766
    %v768 = vand.u32 %v128, 4294901760
    %v769 = vsub.f32 %v128, %v768
    %770 = vmatprep.subr.mxu0 %v769
    %v771 = vand.u32 %v127, 4294901760
    %v772 = vsub.f32 %v127, %v771
    %773 = vmatpush1.msra.mxu0 %v772
    %v774 = vand.u32 %v130, 4294901760
    %v775 = vsub.f32 %v130, %v774
    %776 = vmatprep.subr.mxu0 %v775
    %v777 = vand.u32 %v129, 4294901760
    %v778 = vsub.f32 %v129, %v777
    %779 = vmatpush1.msra.mxu0 %v778
    %v780 = vand.u32 %v132, 4294901760
    %v781 = vsub.f32 %v132, %v780
    %782 = vmatprep.subr.mxu0 %v781
    %v783 = vand.u32 %v131, 4294901760
    %v784 = vsub.f32 %v131, %v783
    %785 = vmatpush1.msra.mxu0 %v784
    %v786 = vand.u32 %v134, 4294901760
    %v787 = vsub.f32 %v134, %v786
    %788 = vmatprep.subr.mxu0 %v787
    %v789 = vand.u32 %v133, 4294901760
    %v790 = vsub.f32 %v133, %v789
    %791 = vmatpush1.msra.mxu0 %v790
    %v792 = vand.u32 %v136, 4294901760
    %v793 = vsub.f32 %v136, %v792
    %794 = vmatprep.subr.mxu0 %v793
    %v795 = vand.u32 %v135, 4294901760
    %v796 = vsub.f32 %v135, %v795
    %797 = vmatpush1.msra.mxu0 %v796
    %v798 = vand.u32 %v138, 4294901760
    %v799 = vsub.f32 %v138, %v798
    %800 = vmatprep.subr.mxu0 %v799
    %v801 = vand.u32 %v137, 4294901760
    %v802 = vsub.f32 %v137, %v801
    %803 = vmatpush1.msra.mxu0 %v802
    %v804 = vand.u32 %v140, 4294901760
    %v805 = vsub.f32 %v140, %v804
    %806 = vmatprep.subr.mxu0 %v805
    %v807 = vand.u32 %v139, 4294901760
    %v808 = vsub.f32 %v139, %v807
    %809 = vmatpush1.msra.mxu0 %v808
    %v810 = vand.u32 %v142, 4294901760
    %v811 = vsub.f32 %v142, %v810
    %812 = vmatprep.subr.mxu0 %v811
    %v813 = vand.u32 %v141, 4294901760
    %v814 = vsub.f32 %v141, %v813
    %815 = vmatpush1.msra.mxu0 %v814
    %v816 = vand.u32 %v144, 4294901760
    %v817 = vsub.f32 %v144, %v816
    %818 = vmatprep.subr.mxu0 %v817
    %v819 = vand.u32 %v143, 4294901760
    %v820 = vsub.f32 %v143, %v819
    %821 = vmatpush1.msra.mxu0 %v820
    %v822 = vand.u32 %v146, 4294901760
    %v823 = vsub.f32 %v146, %v822
    %824 = vmatprep.subr.mxu0 %v823
    %v825 = vand.u32 %v145, 4294901760
    %v826 = vsub.f32 %v145, %v825
    %827 = vmatpush1.msra.mxu0 %v826
    %v828 = vand.u32 %v148, 4294901760
    %v829 = vsub.f32 %v148, %v828
    %830 = vmatprep.subr.mxu0 %v829
    %v831 = vand.u32 %v147, 4294901760
    %v832 = vsub.f32 %v147, %v831
    %833 = vmatpush1.msra.mxu0 %v832
    %v834 = vand.u32 %v150, 4294901760
    %v835 = vsub.f32 %v150, %v834
    %836 = vmatprep.subr.mxu0 %v835
    %v837 = vand.u32 %v149, 4294901760
    %v838 = vsub.f32 %v149, %v837
    %839 = vmatpush1.msra.mxu0 %v838
    %v840 = vand.u32 %v152, 4294901760
    %v841 = vsub.f32 %v152, %v840
    %842 = vmatprep.subr.mxu0 %v841
    %v843 = vand.u32 %v151, 4294901760
    %v844 = vsub.f32 %v151, %v843
    %845 = vmatpush1.msra.mxu0 %v844
    %v846 = vand.u32 %v154, 4294901760
    %v847 = vsub.f32 %v154, %v846
    %848 = vmatprep.subr.mxu0 %v847
    %v849 = vand.u32 %v153, 4294901760
    %v850 = vsub.f32 %v153, %v849
    %851 = vmatpush1.msra.mxu0 %v850
    %v852 = vand.u32 %v156, 4294901760
    %v853 = vsub.f32 %v156, %v852
    %854 = vmatprep.subr.mxu0 %v853
    %v855 = vand.u32 %v155, 4294901760
    %v856 = vsub.f32 %v155, %v855
    %857 = vmatpush1.msra.mxu0 %v856
    %v858 = vand.u32 %v158, 4294901760
    %v859 = vsub.f32 %v158, %v858
    %860 = vmatprep.subr.mxu0 %v859
    %v861 = vand.u32 %v157, 4294901760
    %v862 = vsub.f32 %v157, %v861
    %863 = vmatpush1.msra.mxu0 %v862
    %v864 = vand.u32 %v160, 4294901760
    %v865 = vsub.f32 %v160, %v864
    %866 = vmatprep.subr.mxu0 %v865
    %v867 = vand.u32 %v159, 4294901760
    %v868 = vsub.f32 %v159, %v867
    %869 = vmatpush1.msra.mxu0 %v868
    %v870 = vand.u32 %v162, 4294901760
    %v871 = vsub.f32 %v162, %v870
    %872 = vmatprep.subr.mxu0 %v871
    %v873 = vand.u32 %v161, 4294901760
    %v874 = vsub.f32 %v161, %v873
    %875 = vmatpush1.msra.mxu0 %v874
    %v876 = vand.u32 %v164, 4294901760
    %v877 = vsub.f32 %v164, %v876
    %878 = vmatprep.subr.mxu0 %v877
    %v879 = vand.u32 %v163, 4294901760
    %v880 = vsub.f32 %v163, %v879
    %881 = vmatpush1.msra.mxu0 %v880
    %v882 = vand.u32 %v166, 4294901760
    %v883 = vsub.f32 %v166, %v882
    %884 = vmatprep.subr.mxu0 %v883
    %v885 = vand.u32 %v165, 4294901760
    %v886 = vsub.f32 %v165, %v885
    %887 = vmatpush1.msra.mxu0 %v886
    %v888 = vand.u32 %v168, 4294901760
    %v889 = vsub.f32 %v168, %v888
    %890 = vmatprep.subr.mxu0 %v889
    %v891 = vand.u32 %v167, 4294901760
    %v892 = vsub.f32 %v167, %v891
    %893 = vmatpush1.msra.mxu0 %v892
    %v894 = vand.u32 %v170, 4294901760
    %v895 = vsub.f32 %v170, %v894
    %896 = vmatprep.subr.mxu0 %v895
    %v897 = vand.u32 %v169, 4294901760
    %v898 = vsub.f32 %v169, %v897
    %899 = vmatpush1.msra.mxu0 %v898
    %v900 = vand.u32 %v172, 4294901760
    %v901 = vsub.f32 %v172, %v900
    %902 = vmatprep.subr.mxu0 %v901
    %v903 = vand.u32 %v171, 4294901760
    %v904 = vsub.f32 %v171, %v903
    %905 = vmatpush1.msra.mxu0 %v904
    %v906 = vand.u32 %v174, 4294901760
    %v907 = vsub.f32 %v174, %v906
    %908 = vmatprep.subr.mxu0 %v907
    %v909 = vand.u32 %v173, 4294901760
    %v910 = vsub.f32 %v173, %v909
    %911 = vmatpush1.msra.mxu0 %v910
    %v912 = vand.u32 %v176, 4294901760
    %v913 = vsub.f32 %v176, %v912
    %914 = vmatprep.subr.mxu0 %v913
    %v915 = vand.u32 %v175, 4294901760
    %v916 = vsub.f32 %v175, %v915
    %917 = vmatpush1.msra.mxu0 %v916
    %v918 = vand.u32 %v185, 4294901760
    %v919 = vsub.f32 %v185, %v918
    %920 = vmatprep.mubr.f32.mxu0 %v919
    %v921 = vand.u32 %v184, 4294901760
    %v922 = vsub.f32 %v184, %v921
    %923 = vmatmul.mubr.f32.gmra.mrb[0].mxu0 %v922
    %v924 = vpop.f32.mrb[0].mxu0
    %v925 = vadd.f32 %v722, %v924
    %v926 = vpop.f32.mrb[0].mxu0
    %v927 = vadd.f32 %v724, %v926
    %928 = vdwg.mxu0
    %v929 = vand.u32 %v114, 4294901760
    %930 = vmatprep.subr.mxu0 %v929
    %v931 = vand.u32 %v113, 4294901760
    %932 = vmatpush1.msra.mxu0 %v931
    %v933 = vand.u32 %v116, 4294901760
    %934 = vmatprep.subr.mxu0 %v933
    %v935 = vand.u32 %v115, 4294901760
    %936 = vmatpush1.msra.mxu0 %v935
    %v937 = vand.u32 %v118, 4294901760
    %938 = vmatprep.subr.mxu0 %v937
    %v939 = vand.u32 %v117, 4294901760
    %940 = vmatpush1.msra.mxu0 %v939
    %v941 = vand.u32 %v120, 4294901760
    %942 = vmatprep.subr.mxu0 %v941
    %v943 = vand.u32 %v119, 4294901760
    %944 = vmatpush1.msra.mxu0 %v943
    %v945 = vand.u32 %v122, 4294901760
    %946 = vmatprep.subr.mxu0 %v945
    %v947 = vand.u32 %v121, 4294901760
    %948 = vmatpush1.msra.mxu0 %v947
    %v949 = vand.u32 %v124, 4294901760
    %950 = vmatprep.subr.mxu0 %v949
    %v951 = vand.u32 %v123, 4294901760
    %952 = vmatpush1.msra.mxu0 %v951
    %v953 = vand.u32 %v126, 4294901760
    %954 = vmatprep.subr.mxu0 %v953
    %v955 = vand.u32 %v125, 4294901760
    %956 = vmatpush1.msra.mxu0 %v955
    %v957 = vand.u32 %v128, 4294901760
    %958 = vmatprep.subr.mxu0 %v957
    %v959 = vand.u32 %v127, 4294901760
    %960 = vmatpush1.msra.mxu0 %v959
    %v961 = vand.u32 %v130, 4294901760
    %962 = vmatprep.subr.mxu0 %v961
    %v963 = vand.u32 %v129, 4294901760
    %964 = vmatpush1.msra.mxu0 %v963
    %v965 = vand.u32 %v132, 4294901760
    %966 = vmatprep.subr.mxu0 %v965
    %v967 = vand.u32 %v131, 4294901760
    %968 = vmatpush1.msra.mxu0 %v967
    %v969 = vand.u32 %v134, 4294901760
    %970 = vmatprep.subr.mxu0 %v969
    %v971 = vand.u32 %v133, 4294901760
    %972 = vmatpush1.msra.mxu0 %v971
    %v973 = vand.u32 %v136, 4294901760
    %974 = vmatprep.subr.mxu0 %v973
    %v975 = vand.u32 %v135, 4294901760
    %976 = vmatpush1.msra.mxu0 %v975
    %v977 = vand.u32 %v138, 4294901760
    %978 = vmatprep.subr.mxu0 %v977
    %v979 = vand.u32 %v137, 4294901760
    %980 = vmatpush1.msra.mxu0 %v979
    %v981 = vand.u32 %v140, 4294901760
    %982 = vmatprep.subr.mxu0 %v981
    %v983 = vand.u32 %v139, 4294901760
    %984 = vmatpush1.msra.mxu0 %v983
    %v985 = vand.u32 %v142, 4294901760
    %986 = vmatprep.subr.mxu0 %v985
    %v987 = vand.u32 %v141, 4294901760
    %988 = vmatpush1.msra.mxu0 %v987
    %v989 = vand.u32 %v144, 4294901760
    %990 = vmatprep.subr.mxu0 %v989
    %v991 = vand.u32 %v143, 4294901760
    %992 = vmatpush1.msra.mxu0 %v991
    %v993 = vand.u32 %v146, 4294901760
    %994 = vmatprep.subr.mxu0 %v993
    %v995 = vand.u32 %v145, 4294901760
    %996 = vmatpush1.msra.mxu0 %v995
    %v997 = vand.u32 %v148, 4294901760
    %998 = vmatprep.subr.mxu0 %v997
    %v999 = vand.u32 %v147, 4294901760
    %1000 = vmatpush1.msra.mxu0 %v999
    %v1001 = vand.u32 %v150, 4294901760
    %1002 = vmatprep.subr.mxu0 %v1001
    %v1003 = vand.u32 %v149, 4294901760
    %1004 = vmatpush1.msra.mxu0 %v1003
    %v1005 = vand.u32 %v152, 4294901760
    %1006 = vmatprep.subr.mxu0 %v1005
    %v1007 = vand.u32 %v151, 4294901760
    %1008 = vmatpush1.msra.mxu0 %v1007
    %v1009 = vand.u32 %v154, 4294901760
    %1010 = vmatprep.subr.mxu0 %v1009
    %v1011 = vand.u32 %v153, 4294901760
    %1012 = vmatpush1.msra.mxu0 %v1011
    %v1013 = vand.u32 %v156, 4294901760
    %1014 = vmatprep.subr.mxu0 %v1013
    %v1015 = vand.u32 %v155, 4294901760
    %1016 = vmatpush1.msra.mxu0 %v1015
    %v1017 = vand.u32 %v158, 4294901760
    %1018 = vmatprep.subr.mxu0 %v1017
    %v1019 = vand.u32 %v157, 4294901760
    %1020 = vmatpush1.msra.mxu0 %v1019
    %v1021 = vand.u32 %v160, 4294901760
    %1022 = vmatprep.subr.mxu0 %v1021
    %v1023 = vand.u32 %v159, 4294901760
    %1024 = vmatpush1.msra.mxu0 %v1023
    %v1025 = vand.u32 %v162, 4294901760
    %1026 = vmatprep.subr.mxu0 %v1025
    %v1027 = vand.u32 %v161, 4294901760
    %1028 = vmatpush1.msra.mxu0 %v1027
    %v1029 = vand.u32 %v164, 4294901760
    %1030 = vmatprep.subr.mxu0 %v1029
    %v1031 = vand.u32 %v163, 4294901760
    %1032 = vmatpush1.msra.mxu0 %v1031
    %v1033 = vand.u32 %v166, 4294901760
    %1034 = vmatprep.subr.mxu0 %v1033
    %v1035 = vand.u32 %v165, 4294901760
    %1036 = vmatpush1.msra.mxu0 %v1035
    %v1037 = vand.u32 %v168, 4294901760
    %1038 = vmatprep.subr.mxu0 %v1037
    %v1039 = vand.u32 %v167, 4294901760
    %1040 = vmatpush1.msra.mxu0 %v1039
    %v1041 = vand.u32 %v170, 4294901760
    %1042 = vmatprep.subr.mxu0 %v1041
    %v1043 = vand.u32 %v169, 4294901760
    %1044 = vmatpush1.msra.mxu0 %v1043
    %v1045 = vand.u32 %v172, 4294901760
    %1046 = vmatprep.subr.mxu0 %v1045
    %v1047 = vand.u32 %v171, 4294901760
    %1048 = vmatpush1.msra.mxu0 %v1047
    %v1049 = vand.u32 %v174, 4294901760
    %1050 = vmatprep.subr.mxu0 %v1049
    %v1051 = vand.u32 %v173, 4294901760
    %1052 = vmatpush1.msra.mxu0 %v1051
    %v1053 = vand.u32 %v176, 4294901760
    %1054 = vmatprep.subr.mxu0 %v1053
    %v1055 = vand.u32 %v175, 4294901760
    %1056 = vmatpush1.msra.mxu0 %v1055
    %v1057 = vand.u32 %v185, 4294901760
    %v1058 = vsub.f32 %v185, %v1057
    %v1059 = vand.u32 %v1058, 4294901760
    %1060 = vmatprep.mubr.f32.mxu0 %v1059
    %v1061 = vand.u32 %v184, 4294901760
    %v1062 = vsub.f32 %v184, %v1061
    %v1063 = vand.u32 %v1062, 4294901760
    %1064 = vmatmul.mubr.f32.gmra.mrb[0].mxu0 %v1063
    %v1065 = vpop.f32.mrb[0].mxu0
    %v1066 = vadd.f32 %v925, %v1065
    %v1067 = vpop.f32.mrb[0].mxu0
    %v1068 = vadd.f32 %v927, %v1067
    %1069 = vdwg.mxu0
    %v1070 = vand.u32 %v114, 4294901760
    %v1071 = vsub.f32 %v114, %v1070
    %v1072 = vand.u32 %v1071, 4294901760
    %1073 = vmatprep.subr.mxu0 %v1072
    %v1074 = vand.u32 %v113, 4294901760
    %v1075 = vsub.f32 %v113, %v1074
    %v1076 = vand.u32 %v1075, 4294901760
    %1077 = vmatpush1.msra.mxu0 %v1076
    %v1078 = vand.u32 %v116, 4294901760
    %v1079 = vsub.f32 %v116, %v1078
    %v1080 = vand.u32 %v1079, 4294901760
    %1081 = vmatprep.subr.mxu0 %v1080
    %v1082 = vand.u32 %v115, 4294901760
    %v1083 = vsub.f32 %v115, %v1082
    %v1084 = vand.u32 %v1083, 4294901760
    %1085 = vmatpush1.msra.mxu0 %v1084
    %v1086 = vand.u32 %v118, 4294901760
    %v1087 = vsub.f32 %v118, %v1086
    %v1088 = vand.u32 %v1087, 4294901760
    %1089 = vmatprep.subr.mxu0 %v1088
    %v1090 = vand.u32 %v117, 4294901760
    %v1091 = vsub.f32 %v117, %v1090
    %v1092 = vand.u32 %v1091, 4294901760
    %1093 = vmatpush1.msra.mxu0 %v1092
    %v1094 = vand.u32 %v120, 4294901760
    %v1095 = vsub.f32 %v120, %v1094
    %v1096 = vand.u32 %v1095, 4294901760
    %1097 = vmatprep.subr.mxu0 %v1096
    %v1098 = vand.u32 %v119, 4294901760
    %v1099 = vsub.f32 %v119, %v1098
    %v1100 = vand.u32 %v1099, 4294901760
    %1101 = vmatpush1.msra.mxu0 %v1100
    %v1102 = vand.u32 %v122, 4294901760
    %v1103 = vsub.f32 %v122, %v1102
    %v1104 = vand.u32 %v1103, 4294901760
    %1105 = vmatprep.subr.mxu0 %v1104
    %v1106 = vand.u32 %v121, 4294901760
    %v1107 = vsub.f32 %v121, %v1106
    %v1108 = vand.u32 %v1107, 4294901760
    %1109 = vmatpush1.msra.mxu0 %v1108
    %v1110 = vand.u32 %v124, 4294901760
    %v1111 = vsub.f32 %v124, %v1110
    %v1112 = vand.u32 %v1111, 4294901760
    %1113 = vmatprep.subr.mxu0 %v1112
    %v1114 = vand.u32 %v123, 4294901760
    %v1115 = vsub.f32 %v123, %v1114
    %v1116 = vand.u32 %v1115, 4294901760
    %1117 = vmatpush1.msra.mxu0 %v1116
    %v1118 = vand.u32 %v126, 4294901760
    %v1119 = vsub.f32 %v126, %v1118
    %v1120 = vand.u32 %v1119, 4294901760
    %1121 = vmatprep.subr.mxu0 %v1120
    %v1122 = vand.u32 %v125, 4294901760
    %v1123 = vsub.f32 %v125, %v1122
    %v1124 = vand.u32 %v1123, 4294901760
    %1125 = vmatpush1.msra.mxu0 %v1124
    %v1126 = vand.u32 %v128, 4294901760
    %v1127 = vsub.f32 %v128, %v1126
    %v1128 = vand.u32 %v1127, 4294901760
    %1129 = vmatprep.subr.mxu0 %v1128
    %v1130 = vand.u32 %v127, 4294901760
    %v1131 = vsub.f32 %v127, %v1130
    %v1132 = vand.u32 %v1131, 4294901760
    %1133 = vmatpush1.msra.mxu0 %v1132
    %v1134 = vand.u32 %v130, 4294901760
    %v1135 = vsub.f32 %v130, %v1134
    %v1136 = vand.u32 %v1135, 4294901760
    %1137 = vmatprep.subr.mxu0 %v1136
    %v1138 = vand.u32 %v129, 4294901760
    %v1139 = vsub.f32 %v129, %v1138
    %v1140 = vand.u32 %v1139, 4294901760
    %1141 = vmatpush1.msra.mxu0 %v1140
    %v1142 = vand.u32 %v132, 4294901760
    %v1143 = vsub.f32 %v132, %v1142
    %v1144 = vand.u32 %v1143, 4294901760
    %1145 = vmatprep.subr.mxu0 %v1144
    %v1146 = vand.u32 %v131, 4294901760
    %v1147 = vsub.f32 %v131, %v1146
    %v1148 = vand.u32 %v1147, 4294901760
    %1149 = vmatpush1.msra.mxu0 %v1148
    %v1150 = vand.u32 %v134, 4294901760
    %v1151 = vsub.f32 %v134, %v1150
    %v1152 = vand.u32 %v1151, 4294901760
    %1153 = vmatprep.subr.mxu0 %v1152
    %v1154 = vand.u32 %v133, 4294901760
    %v1155 = vsub.f32 %v133, %v1154
    %v1156 = vand.u32 %v1155, 4294901760
    %1157 = vmatpush1.msra.mxu0 %v1156
    %v1158 = vand.u32 %v136, 4294901760
    %v1159 = vsub.f32 %v136, %v1158
    %v1160 = vand.u32 %v1159, 4294901760
    %1161 = vmatprep.subr.mxu0 %v1160
    %v1162 = vand.u32 %v135, 4294901760
    %v1163 = vsub.f32 %v135, %v1162
    %v1164 = vand.u32 %v1163, 4294901760
    %1165 = vmatpush1.msra.mxu0 %v1164
    %v1166 = vand.u32 %v138, 4294901760
    %v1167 = vsub.f32 %v138, %v1166
    %v1168 = vand.u32 %v1167, 4294901760
    %1169 = vmatprep.subr.mxu0 %v1168
    %v1170 = vand.u32 %v137, 4294901760
    %v1171 = vsub.f32 %v137, %v1170
    %v1172 = vand.u32 %v1171, 4294901760
    %1173 = vmatpush1.msra.mxu0 %v1172
    %v1174 = vand.u32 %v140, 4294901760
    %v1175 = vsub.f32 %v140, %v1174
    %v1176 = vand.u32 %v1175, 4294901760
    %1177 = vmatprep.subr.mxu0 %v1176
    %v1178 = vand.u32 %v139, 4294901760
    %v1179 = vsub.f32 %v139, %v1178
    %v1180 = vand.u32 %v1179, 4294901760
    %1181 = vmatpush1.msra.mxu0 %v1180
    %v1182 = vand.u32 %v142, 4294901760
    %v1183 = vsub.f32 %v142, %v1182
    %v1184 = vand.u32 %v1183, 4294901760
    %1185 = vmatprep.subr.mxu0 %v1184
    %v1186 = vand.u32 %v141, 4294901760
    %v1187 = vsub.f32 %v141, %v1186
    %v1188 = vand.u32 %v1187, 4294901760
    %1189 = vmatpush1.msra.mxu0 %v1188
    %v1190 = vand.u32 %v144, 4294901760
    %v1191 = vsub.f32 %v144, %v1190
    %v1192 = vand.u32 %v1191, 4294901760
    %1193 = vmatprep.subr.mxu0 %v1192
    %v1194 = vand.u32 %v143, 4294901760
    %v1195 = vsub.f32 %v143, %v1194
    %v1196 = vand.u32 %v1195, 4294901760
    %1197 = vmatpush1.msra.mxu0 %v1196
    %v1198 = vand.u32 %v146, 4294901760
    %v1199 = vsub.f32 %v146, %v1198
    %v1200 = vand.u32 %v1199, 4294901760
    %1201 = vmatprep.subr.mxu0 %v1200
    %v1202 = vand.u32 %v145, 4294901760
    %v1203 = vsub.f32 %v145, %v1202
    %v1204 = vand.u32 %v1203, 4294901760
    %1205 = vmatpush1.msra.mxu0 %v1204
    %v1206 = vand.u32 %v148, 4294901760
    %v1207 = vsub.f32 %v148, %v1206
    %v1208 = vand.u32 %v1207, 4294901760
    %1209 = vmatprep.subr.mxu0 %v1208
    %v1210 = vand.u32 %v147, 4294901760
    %v1211 = vsub.f32 %v147, %v1210
    %v1212 = vand.u32 %v1211, 4294901760
    %1213 = vmatpush1.msra.mxu0 %v1212
    %v1214 = vand.u32 %v150, 4294901760
    %v1215 = vsub.f32 %v150, %v1214
    %v1216 = vand.u32 %v1215, 4294901760
    %1217 = vmatprep.subr.mxu0 %v1216
    %v1218 = vand.u32 %v149, 4294901760
    %v1219 = vsub.f32 %v149, %v1218
    %v1220 = vand.u32 %v1219, 4294901760
    %1221 = vmatpush1.msra.mxu0 %v1220
    %v1222 = vand.u32 %v152, 4294901760
    %v1223 = vsub.f32 %v152, %v1222
    %v1224 = vand.u32 %v1223, 4294901760
    %1225 = vmatprep.subr.mxu0 %v1224
    %v1226 = vand.u32 %v151, 4294901760
    %v1227 = vsub.f32 %v151, %v1226
    %v1228 = vand.u32 %v1227, 4294901760
    %1229 = vmatpush1.msra.mxu0 %v1228
    %v1230 = vand.u32 %v154, 4294901760
    %v1231 = vsub.f32 %v154, %v1230
    %v1232 = vand.u32 %v1231, 4294901760
    %1233 = vmatprep.subr.mxu0 %v1232
    %v1234 = vand.u32 %v153, 4294901760
    %v1235 = vsub.f32 %v153, %v1234
    %v1236 = vand.u32 %v1235, 4294901760
    %1237 = vmatpush1.msra.mxu0 %v1236
    %v1238 = vand.u32 %v156, 4294901760
    %v1239 = vsub.f32 %v156, %v1238
    %v1240 = vand.u32 %v1239, 4294901760
    %1241 = vmatprep.subr.mxu0 %v1240
    %v1242 = vand.u32 %v155, 4294901760
    %v1243 = vsub.f32 %v155, %v1242
    %v1244 = vand.u32 %v1243, 4294901760
    %1245 = vmatpush1.msra.mxu0 %v1244
    %v1246 = vand.u32 %v158, 4294901760
    %v1247 = vsub.f32 %v158, %v1246
    %v1248 = vand.u32 %v1247, 4294901760
    %1249 = vmatprep.subr.mxu0 %v1248
    %v1250 = vand.u32 %v157, 4294901760
    %v1251 = vsub.f32 %v157, %v1250
    %v1252 = vand.u32 %v1251, 4294901760
    %1253 = vmatpush1.msra.mxu0 %v1252
    %v1254 = vand.u32 %v160, 4294901760
    %v1255 = vsub.f32 %v160, %v1254
    %v1256 = vand.u32 %v1255, 4294901760
    %1257 = vmatprep.subr.mxu0 %v1256
    %v1258 = vand.u32 %v159, 4294901760
    %v1259 = vsub.f32 %v159, %v1258
    %v1260 = vand.u32 %v1259, 4294901760
    %1261 = vmatpush1.msra.mxu0 %v1260
    %v1262 = vand.u32 %v162, 4294901760
    %v1263 = vsub.f32 %v162, %v1262
    %v1264 = vand.u32 %v1263, 4294901760
    %1265 = vmatprep.subr.mxu0 %v1264
    %v1266 = vand.u32 %v161, 4294901760
    %v1267 = vsub.f32 %v161, %v1266
    %v1268 = vand.u32 %v1267, 4294901760
    %1269 = vmatpush1.msra.mxu0 %v1268
    %v1270 = vand.u32 %v164, 4294901760
    %v1271 = vsub.f32 %v164, %v1270
    %v1272 = vand.u32 %v1271, 4294901760
    %1273 = vmatprep.subr.mxu0 %v1272
    %v1274 = vand.u32 %v163, 4294901760
    %v1275 = vsub.f32 %v163, %v1274
    %v1276 = vand.u32 %v1275, 4294901760
    %1277 = vmatpush1.msra.mxu0 %v1276
    %v1278 = vand.u32 %v166, 4294901760
    %v1279 = vsub.f32 %v166, %v1278
    %v1280 = vand.u32 %v1279, 4294901760
    %1281 = vmatprep.subr.mxu0 %v1280
    %v1282 = vand.u32 %v165, 4294901760
    %v1283 = vsub.f32 %v165, %v1282
    %v1284 = vand.u32 %v1283, 4294901760
    %1285 = vmatpush1.msra.mxu0 %v1284
    %v1286 = vand.u32 %v168, 4294901760
    %v1287 = vsub.f32 %v168, %v1286
    %v1288 = vand.u32 %v1287, 4294901760
    %1289 = vmatprep.subr.mxu0 %v1288
    %v1290 = vand.u32 %v167, 4294901760
    %v1291 = vsub.f32 %v167, %v1290
    %v1292 = vand.u32 %v1291, 4294901760
    %1293 = vmatpush1.msra.mxu0 %v1292
    %v1294 = vand.u32 %v170, 4294901760
    %v1295 = vsub.f32 %v170, %v1294
    %v1296 = vand.u32 %v1295, 4294901760
    %1297 = vmatprep.subr.mxu0 %v1296
    %v1298 = vand.u32 %v169, 4294901760
    %v1299 = vsub.f32 %v169, %v1298
    %v1300 = vand.u32 %v1299, 4294901760
    %1301 = vmatpush1.msra.mxu0 %v1300
    %v1302 = vand.u32 %v172, 4294901760
    %v1303 = vsub.f32 %v172, %v1302
    %v1304 = vand.u32 %v1303, 4294901760
    %1305 = vmatprep.subr.mxu0 %v1304
    %v1306 = vand.u32 %v171, 4294901760
    %v1307 = vsub.f32 %v171, %v1306
    %v1308 = vand.u32 %v1307, 4294901760
    %1309 = vmatpush1.msra.mxu0 %v1308
    %v1310 = vand.u32 %v174, 4294901760
    %v1311 = vsub.f32 %v174, %v1310
    %v1312 = vand.u32 %v1311, 4294901760
    %1313 = vmatprep.subr.mxu0 %v1312
    %v1314 = vand.u32 %v173, 4294901760
    %v1315 = vsub.f32 %v173, %v1314
    %v1316 = vand.u32 %v1315, 4294901760
    %1317 = vmatpush1.msra.mxu0 %v1316
    %v1318 = vand.u32 %v176, 4294901760
    %v1319 = vsub.f32 %v176, %v1318
    %v1320 = vand.u32 %v1319, 4294901760
    %1321 = vmatprep.subr.mxu0 %v1320
    %v1322 = vand.u32 %v175, 4294901760
    %v1323 = vsub.f32 %v175, %v1322
    %v1324 = vand.u32 %v1323, 4294901760
    %1325 = vmatpush1.msra.mxu0 %v1324
    %v1326 = vand.u32 %v185, 4294901760
    %1327 = vmatprep.mubr.f32.mxu0 %v1326
    %v1328 = vand.u32 %v184, 4294901760
    %1329 = vmatmul.mubr.f32.gmra.mrb[0].mxu0 %v1328
    %v1330 = vpop.f32.mrb[0].mxu0
    %v1331 = vadd.f32 %v1066, %v1330
    %v1332 = vpop.f32.mrb[0].mxu0
    %v1333 = vadd.f32 %v1068, %v1332
    %1334 = vdwg.mxu0
    %v1335 = vand.u32 %v114, 4294901760
    %1336 = vmatprep.subr.mxu0 %v1335
    %v1337 = vand.u32 %v113, 4294901760
    %1338 = vmatpush1.msra.mxu0 %v1337
    %v1339 = vand.u32 %v116, 4294901760
    %1340 = vmatprep.subr.mxu0 %v1339
    %v1341 = vand.u32 %v115, 4294901760
    %1342 = vmatpush1.msra.mxu0 %v1341
    %v1343 = vand.u32 %v118, 4294901760
    %1344 = vmatprep.subr.mxu0 %v1343
    %v1345 = vand.u32 %v117, 4294901760
    %1346 = vmatpush1.msra.mxu0 %v1345
    %v1347 = vand.u32 %v120, 4294901760
    %1348 = vmatprep.subr.mxu0 %v1347
    %v1349 = vand.u32 %v119, 4294901760
    %1350 = vmatpush1.msra.mxu0 %v1349
    %v1351 = vand.u32 %v122, 4294901760
    %1352 = vmatprep.subr.mxu0 %v1351
    %v1353 = vand.u32 %v121, 4294901760
    %1354 = vmatpush1.msra.mxu0 %v1353
    %v1355 = vand.u32 %v124, 4294901760
    %1356 = vmatprep.subr.mxu0 %v1355
    %v1357 = vand.u32 %v123, 4294901760
    %1358 = vmatpush1.msra.mxu0 %v1357
    %v1359 = vand.u32 %v126, 4294901760
    %1360 = vmatprep.subr.mxu0 %v1359
    %v1361 = vand.u32 %v125, 4294901760
    %1362 = vmatpush1.msra.mxu0 %v1361
    %v1363 = vand.u32 %v128, 4294901760
    %1364 = vmatprep.subr.mxu0 %v1363
    %v1365 = vand.u32 %v127, 4294901760
    %1366 = vmatpush1.msra.mxu0 %v1365
    %v1367 = vand.u32 %v130, 4294901760
    %1368 = vmatprep.subr.mxu0 %v1367
    %v1369 = vand.u32 %v129, 4294901760
    %1370 = vmatpush1.msra.mxu0 %v1369
    %v1371 = vand.u32 %v132, 4294901760
    %1372 = vmatprep.subr.mxu0 %v1371
    %v1373 = vand.u32 %v131, 4294901760
    %1374 = vmatpush1.msra.mxu0 %v1373
    %v1375 = vand.u32 %v134, 4294901760
    %1376 = vmatprep.subr.mxu0 %v1375
    %v1377 = vand.u32 %v133, 4294901760
    %1378 = vmatpush1.msra.mxu0 %v1377
    %v1379 = vand.u32 %v136, 4294901760
    %1380 = vmatprep.subr.mxu0 %v1379
    %v1381 = vand.u32 %v135, 4294901760
    %1382 = vmatpush1.msra.mxu0 %v1381
    %v1383 = vand.u32 %v138, 4294901760
    %1384 = vmatprep.subr.mxu0 %v1383
    %v1385 = vand.u32 %v137, 4294901760
    %1386 = vmatpush1.msra.mxu0 %v1385
    %v1387 = vand.u32 %v140, 4294901760
    %1388 = vmatprep.subr.mxu0 %v1387
    %v1389 = vand.u32 %v139, 4294901760
    %1390 = vmatpush1.msra.mxu0 %v1389
    %v1391 = vand.u32 %v142, 4294901760
    %1392 = vmatprep.subr.mxu0 %v1391
    %v1393 = vand.u32 %v141, 4294901760
    %1394 = vmatpush1.msra.mxu0 %v1393
    %v1395 = vand.u32 %v144, 4294901760
    %1396 = vmatprep.subr.mxu0 %v1395
    %v1397 = vand.u32 %v143, 4294901760
    %1398 = vmatpush1.msra.mxu0 %v1397
    %v1399 = vand.u32 %v146, 4294901760
    %1400 = vmatprep.subr.mxu0 %v1399
    %v1401 = vand.u32 %v145, 4294901760
    %1402 = vmatpush1.msra.mxu0 %v1401
    %v1403 = vand.u32 %v148, 4294901760
    %1404 = vmatprep.subr.mxu0 %v1403
    %v1405 = vand.u32 %v147, 4294901760
    %1406 = vmatpush1.msra.mxu0 %v1405
    %v1407 = vand.u32 %v150, 4294901760
    %1408 = vmatprep.subr.mxu0 %v1407
    %v1409 = vand.u32 %v149, 4294901760
    %1410 = vmatpush1.msra.mxu0 %v1409
    %v1411 = vand.u32 %v152, 4294901760
    %1412 = vmatprep.subr.mxu0 %v1411
    %v1413 = vand.u32 %v151, 4294901760
    %1414 = vmatpush1.msra.mxu0 %v1413
    %v1415 = vand.u32 %v154, 4294901760
    %1416 = vmatprep.subr.mxu0 %v1415
    %v1417 = vand.u32 %v153, 4294901760
    %1418 = vmatpush1.msra.mxu0 %v1417
    %v1419 = vand.u32 %v156, 4294901760
    %1420 = vmatprep.subr.mxu0 %v1419
    %v1421 = vand.u32 %v155, 4294901760
    %1422 = vmatpush1.msra.mxu0 %v1421
    %v1423 = vand.u32 %v158, 4294901760
    %1424 = vmatprep.subr.mxu0 %v1423
    %v1425 = vand.u32 %v157, 4294901760
    %1426 = vmatpush1.msra.mxu0 %v1425
    %v1427 = vand.u32 %v160, 4294901760
    %1428 = vmatprep.subr.mxu0 %v1427
    %v1429 = vand.u32 %v159, 4294901760
    %1430 = vmatpush1.msra.mxu0 %v1429
    %v1431 = vand.u32 %v162, 4294901760
    %1432 = vmatprep.subr.mxu0 %v1431
    %v1433 = vand.u32 %v161, 4294901760
    %1434 = vmatpush1.msra.mxu0 %v1433
    %v1435 = vand.u32 %v164, 4294901760
    %1436 = vmatprep.subr.mxu0 %v1435
    %v1437 = vand.u32 %v163, 4294901760
    %1438 = vmatpush1.msra.mxu0 %v1437
    %v1439 = vand.u32 %v166, 4294901760
    %1440 = vmatprep.subr.mxu0 %v1439
    %v1441 = vand.u32 %v165, 4294901760
    %1442 = vmatpush1.msra.mxu0 %v1441
    %v1443 = vand.u32 %v168, 4294901760
    %1444 = vmatprep.subr.mxu0 %v1443
    %v1445 = vand.u32 %v167, 4294901760
    %1446 = vmatpush1.msra.mxu0 %v1445
    %v1447 = vand.u32 %v170, 4294901760
    %1448 = vmatprep.subr.mxu0 %v1447
    %v1449 = vand.u32 %v169, 4294901760
    %1450 = vmatpush1.msra.mxu0 %v1449
    %v1451 = vand.u32 %v172, 4294901760
    %1452 = vmatprep.subr.mxu0 %v1451
    %v1453 = vand.u32 %v171, 4294901760
    %1454 = vmatpush1.msra.mxu0 %v1453
    %v1455 = vand.u32 %v174, 4294901760
    %1456 = vmatprep.subr.mxu0 %v1455
    %v1457 = vand.u32 %v173, 4294901760
    %1458 = vmatpush1.msra.mxu0 %v1457
    %v1459 = vand.u32 %v176, 4294901760
    %1460 = vmatprep.subr.mxu0 %v1459
    %v1461 = vand.u32 %v175, 4294901760
    %1462 = vmatpush1.msra.mxu0 %v1461
    %v1463 = vand.u32 %v185, 4294901760
    %1464 = vmatprep.mubr.f32.mxu0 %v1463
    %v1465 = vand.u32 %v184, 4294901760
    %1466 = vmatmul.mubr.f32.gmra.mrb[0].mxu0 %v1465
    %v1467 = vpop.f32.mrb[0].mxu0
    %v1468 = vadd.f32 %v1331, %v1467
    %v1469 = vpop.f32.mrb[0].mxu0
    %v1470 = vadd.f32 %v1333, %v1469
    %1471 = vdwg.mxu0
    %v1474 = vunpack.c.l.s4 1983009808
    %v1475 = vunpack.c.0.s8 %v1474
    %v1476 = vlaneseq
    %v1477 = vshrl.u32 %v1476, 7
    %v1478 = vsub.s32 %v1475, %v1477
    %v1479 = vrot.slane %v46, %v1478
    %v1480 = vcombine.high %v1479, %v1479
    %v1483 = vand.u32 %v49, 4294901760
    %1484 = vmatprep.subr.mxu0 %v1483
    %v1485 = vand.u32 %v48, 4294901760
    %1486 = vmatpush1.msra.mxu0 %v1485
    %v1487 = vand.u32 %v51, 4294901760
    %1488 = vmatprep.subr.mxu0 %v1487
    %v1489 = vand.u32 %v50, 4294901760
    %1490 = vmatpush1.msra.mxu0 %v1489
    %v1491 = vand.u32 %v53, 4294901760
    %1492 = vmatprep.subr.mxu0 %v1491
    %v1493 = vand.u32 %v52, 4294901760
    %1494 = vmatpush1.msra.mxu0 %v1493
    %v1495 = vand.u32 %v55, 4294901760
    %1496 = vmatprep.subr.mxu0 %v1495
    %v1497 = vand.u32 %v54, 4294901760
    %1498 = vmatpush1.msra.mxu0 %v1497
    %v1499 = vand.u32 %v57, 4294901760
    %1500 = vmatprep.subr.mxu0 %v1499
    %v1501 = vand.u32 %v56, 4294901760
    %1502 = vmatpush1.msra.mxu0 %v1501
    %v1503 = vand.u32 %v59, 4294901760
    %1504 = vmatprep.subr.mxu0 %v1503
    %v1505 = vand.u32 %v58, 4294901760
    %1506 = vmatpush1.msra.mxu0 %v1505
    %v1507 = vand.u32 %v61, 4294901760
    %1508 = vmatprep.subr.mxu0 %v1507
    %v1509 = vand.u32 %v60, 4294901760
    %1510 = vmatpush1.msra.mxu0 %v1509
    %v1511 = vand.u32 %v63, 4294901760
    %1512 = vmatprep.subr.mxu0 %v1511
    %v1513 = vand.u32 %v62, 4294901760
    %1514 = vmatpush1.msra.mxu0 %v1513
    %v1515 = vand.u32 %v65, 4294901760
    %1516 = vmatprep.subr.mxu0 %v1515
    %v1517 = vand.u32 %v64, 4294901760
    %1518 = vmatpush1.msra.mxu0 %v1517
    %v1519 = vand.u32 %v67, 4294901760
    %1520 = vmatprep.subr.mxu0 %v1519
    %v1521 = vand.u32 %v66, 4294901760
    %1522 = vmatpush1.msra.mxu0 %v1521
    %v1523 = vand.u32 %v69, 4294901760
    %1524 = vmatprep.subr.mxu0 %v1523
    %v1525 = vand.u32 %v68, 4294901760
    %1526 = vmatpush1.msra.mxu0 %v1525
    %v1527 = vand.u32 %v71, 4294901760
    %1528 = vmatprep.subr.mxu0 %v1527
    %v1529 = vand.u32 %v70, 4294901760
    %1530 = vmatpush1.msra.mxu0 %v1529
    %v1531 = vand.u32 %v73, 4294901760
    %1532 = vmatprep.subr.mxu0 %v1531
    %v1533 = vand.u32 %v72, 4294901760
    %1534 = vmatpush1.msra.mxu0 %v1533
    %v1535 = vand.u32 %v75, 4294901760
    %1536 = vmatprep.subr.mxu0 %v1535
    %v1537 = vand.u32 %v74, 4294901760
    %1538 = vmatpush1.msra.mxu0 %v1537
    %v1539 = vand.u32 %v77, 4294901760
    %1540 = vmatprep.subr.mxu0 %v1539
    %v1541 = vand.u32 %v76, 4294901760
    %1542 = vmatpush1.msra.mxu0 %v1541
    %v1543 = vand.u32 %v79, 4294901760
    %1544 = vmatprep.subr.mxu0 %v1543
    %v1545 = vand.u32 %v78, 4294901760
    %1546 = vmatpush1.msra.mxu0 %v1545
    %v1547 = vand.u32 %v81, 4294901760
    %1548 = vmatprep.subr.mxu0 %v1547
    %v1549 = vand.u32 %v80, 4294901760
    %1550 = vmatpush1.msra.mxu0 %v1549
    %v1551 = vand.u32 %v83, 4294901760
    %1552 = vmatprep.subr.mxu0 %v1551
    %v1553 = vand.u32 %v82, 4294901760
    %1554 = vmatpush1.msra.mxu0 %v1553
    %v1555 = vand.u32 %v85, 4294901760
    %1556 = vmatprep.subr.mxu0 %v1555
    %v1557 = vand.u32 %v84, 4294901760
    %1558 = vmatpush1.msra.mxu0 %v1557
    %v1559 = vand.u32 %v87, 4294901760
    %1560 = vmatprep.subr.mxu0 %v1559
    %v1561 = vand.u32 %v86, 4294901760
    %1562 = vmatpush1.msra.mxu0 %v1561
    %v1563 = vand.u32 %v89, 4294901760
    %1564 = vmatprep.subr.mxu0 %v1563
    %v1565 = vand.u32 %v88, 4294901760
    %1566 = vmatpush1.msra.mxu0 %v1565
    %v1567 = vand.u32 %v91, 4294901760
    %1568 = vmatprep.subr.mxu0 %v1567
    %v1569 = vand.u32 %v90, 4294901760
    %1570 = vmatpush1.msra.mxu0 %v1569
    %v1571 = vand.u32 %v93, 4294901760
    %1572 = vmatprep.subr.mxu0 %v1571
    %v1573 = vand.u32 %v92, 4294901760
    %1574 = vmatpush1.msra.mxu0 %v1573
    %v1575 = vand.u32 %v95, 4294901760
    %1576 = vmatprep.subr.mxu0 %v1575
    %v1577 = vand.u32 %v94, 4294901760
    %1578 = vmatpush1.msra.mxu0 %v1577
    %v1579 = vand.u32 %v97, 4294901760
    %1580 = vmatprep.subr.mxu0 %v1579
    %v1581 = vand.u32 %v96, 4294901760
    %1582 = vmatpush1.msra.mxu0 %v1581
    %v1583 = vand.u32 %v99, 4294901760
    %1584 = vmatprep.subr.mxu0 %v1583
    %v1585 = vand.u32 %v98, 4294901760
    %1586 = vmatpush1.msra.mxu0 %v1585
    %v1587 = vand.u32 %v101, 4294901760
    %1588 = vmatprep.subr.mxu0 %v1587
    %v1589 = vand.u32 %v100, 4294901760
    %1590 = vmatpush1.msra.mxu0 %v1589
    %v1591 = vand.u32 %v103, 4294901760
    %1592 = vmatprep.subr.mxu0 %v1591
    %v1593 = vand.u32 %v102, 4294901760
    %1594 = vmatpush1.msra.mxu0 %v1593
    %v1595 = vand.u32 %v105, 4294901760
    %1596 = vmatprep.subr.mxu0 %v1595
    %v1597 = vand.u32 %v104, 4294901760
    %1598 = vmatpush1.msra.mxu0 %v1597
    %v1599 = vand.u32 %v107, 4294901760
    %1600 = vmatprep.subr.mxu0 %v1599
    %v1601 = vand.u32 %v106, 4294901760
    %1602 = vmatpush1.msra.mxu0 %v1601
    %v1603 = vand.u32 %v109, 4294901760
    %1604 = vmatprep.subr.mxu0 %v1603
    %v1605 = vand.u32 %v108, 4294901760
    %1606 = vmatpush1.msra.mxu0 %v1605
    %v1607 = vand.u32 %v111, 4294901760
    %1608 = vmatprep.subr.mxu0 %v1607
    %v1609 = vand.u32 %v110, 4294901760
    %1610 = vmatpush1.msra.mxu0 %v1609
    %v1611 = vand.u32 %v1480, 4294901760
    %v1612 = vsub.f32 %v1480, %v1611
    %v1613 = vand.u32 %v1612, 4294901760
    %v1614 = vsub.f32 %v1612, %v1613
    %v1615 = vand.u32 %v1614, 4294901760
    %1616 = vmatprep.mubr.f32.mxu0 %v1615
    %v1617 = vand.u32 %v1479, 4294901760
    %v1618 = vsub.f32 %v1479, %v1617
    %v1619 = vand.u32 %v1618, 4294901760
    %v1620 = vsub.f32 %v1618, %v1619
    %v1621 = vand.u32 %v1620, 4294901760
    %1622 = vmatmul.mubr.f32.gmra.mrb[0].mxu0 %v1621
    %v1623 = vpop.f32.mrb[0].mxu0
    %v1624 = vadd.f32 %v1468, %v1623
    %v1625 = vpop.f32.mrb[0].mxu0
    %v1626 = vadd.f32 %v1470, %v1625
    %1627 = vdwg.mxu0
    %v1628 = vand.u32 %v49, 4294901760
    %v1629 = vsub.f32 %v49, %v1628
    %v1630 = vand.u32 %v1629, 4294901760
    %v1631 = vsub.f32 %v1629, %v1630
    %v1632 = vand.u32 %v1631, 4294901760
    %1633 = vmatprep.subr.mxu0 %v1632
    %v1634 = vand.u32 %v48, 4294901760
    %v1635 = vsub.f32 %v48, %v1634
    %v1636 = vand.u32 %v1635, 4294901760
    %v1637 = vsub.f32 %v1635, %v1636
    %v1638 = vand.u32 %v1637, 4294901760
    %1639 = vmatpush1.msra.mxu0 %v1638
    %v1640 = vand.u32 %v51, 4294901760
    %v1641 = vsub.f32 %v51, %v1640
    %v1642 = vand.u32 %v1641, 4294901760
    %v1643 = vsub.f32 %v1641, %v1642
    %v1644 = vand.u32 %v1643, 4294901760
    %1645 = vmatprep.subr.mxu0 %v1644
    %v1646 = vand.u32 %v50, 4294901760
    %v1647 = vsub.f32 %v50, %v1646
    %v1648 = vand.u32 %v1647, 4294901760
    %v1649 = vsub.f32 %v1647, %v1648
    %v1650 = vand.u32 %v1649, 4294901760
    %1651 = vmatpush1.msra.mxu0 %v1650
    %v1652 = vand.u32 %v53, 4294901760
    %v1653 = vsub.f32 %v53, %v1652
    %v1654 = vand.u32 %v1653, 4294901760
    %v1655 = vsub.f32 %v1653, %v1654
    %v1656 = vand.u32 %v1655, 4294901760
    %1657 = vmatprep.subr.mxu0 %v1656
    %v1658 = vand.u32 %v52, 4294901760
    %v1659 = vsub.f32 %v52, %v1658
    %v1660 = vand.u32 %v1659, 4294901760
    %v1661 = vsub.f32 %v1659, %v1660
    %v1662 = vand.u32 %v1661, 4294901760
    %1663 = vmatpush1.msra.mxu0 %v1662
    %v1664 = vand.u32 %v55, 4294901760
    %v1665 = vsub.f32 %v55, %v1664
    %v1666 = vand.u32 %v1665, 4294901760
    %v1667 = vsub.f32 %v1665, %v1666
    %v1668 = vand.u32 %v1667, 4294901760
    %1669 = vmatprep.subr.mxu0 %v1668
    %v1670 = vand.u32 %v54, 4294901760
    %v1671 = vsub.f32 %v54, %v1670
    %v1672 = vand.u32 %v1671, 4294901760
    %v1673 = vsub.f32 %v1671, %v1672
    %v1674 = vand.u32 %v1673, 4294901760
    %1675 = vmatpush1.msra.mxu0 %v1674
    %v1676 = vand.u32 %v57, 4294901760
    %v1677 = vsub.f32 %v57, %v1676
    %v1678 = vand.u32 %v1677, 4294901760
    %v1679 = vsub.f32 %v1677, %v1678
    %v1680 = vand.u32 %v1679, 4294901760
    %1681 = vmatprep.subr.mxu0 %v1680
    %v1682 = vand.u32 %v56, 4294901760
    %v1683 = vsub.f32 %v56, %v1682
    %v1684 = vand.u32 %v1683, 4294901760
    %v1685 = vsub.f32 %v1683, %v1684
    %v1686 = vand.u32 %v1685, 4294901760
    %1687 = vmatpush1.msra.mxu0 %v1686
    %v1688 = vand.u32 %v59, 4294901760
    %v1689 = vsub.f32 %v59, %v1688
    %v1690 = vand.u32 %v1689, 4294901760
    %v1691 = vsub.f32 %v1689, %v1690
    %v1692 = vand.u32 %v1691, 4294901760
    %1693 = vmatprep.subr.mxu0 %v1692
    %v1694 = vand.u32 %v58, 4294901760
    %v1695 = vsub.f32 %v58, %v1694
    %v1696 = vand.u32 %v1695, 4294901760
    %v1697 = vsub.f32 %v1695, %v1696
    %v1698 = vand.u32 %v1697, 4294901760
    %1699 = vmatpush1.msra.mxu0 %v1698
    %v1700 = vand.u32 %v61, 4294901760
    %v1701 = vsub.f32 %v61, %v1700
    %v1702 = vand.u32 %v1701, 4294901760
    %v1703 = vsub.f32 %v1701, %v1702
    %v1704 = vand.u32 %v1703, 4294901760
    %1705 = vmatprep.subr.mxu0 %v1704
    %v1706 = vand.u32 %v60, 4294901760
    %v1707 = vsub.f32 %v60, %v1706
    %v1708 = vand.u32 %v1707, 4294901760
    %v1709 = vsub.f32 %v1707, %v1708
    %v1710 = vand.u32 %v1709, 4294901760
    %1711 = vmatpush1.msra.mxu0 %v1710
    %v1712 = vand.u32 %v63, 4294901760
    %v1713 = vsub.f32 %v63, %v1712
    %v1714 = vand.u32 %v1713, 4294901760
    %v1715 = vsub.f32 %v1713, %v1714
    %v1716 = vand.u32 %v1715, 4294901760
    %1717 = vmatprep.subr.mxu0 %v1716
    %v1718 = vand.u32 %v62, 4294901760
    %v1719 = vsub.f32 %v62, %v1718
    %v1720 = vand.u32 %v1719, 4294901760
    %v1721 = vsub.f32 %v1719, %v1720
    %v1722 = vand.u32 %v1721, 4294901760
    %1723 = vmatpush1.msra.mxu0 %v1722
    %v1724 = vand.u32 %v65, 4294901760
    %v1725 = vsub.f32 %v65, %v1724
    %v1726 = vand.u32 %v1725, 4294901760
    %v1727 = vsub.f32 %v1725, %v1726
    %v1728 = vand.u32 %v1727, 4294901760
    %1729 = vmatprep.subr.mxu0 %v1728
    %v1730 = vand.u32 %v64, 4294901760
    %v1731 = vsub.f32 %v64, %v1730
    %v1732 = vand.u32 %v1731, 4294901760
    %v1733 = vsub.f32 %v1731, %v1732
    %v1734 = vand.u32 %v1733, 4294901760
    %1735 = vmatpush1.msra.mxu0 %v1734
    %v1736 = vand.u32 %v67, 4294901760
    %v1737 = vsub.f32 %v67, %v1736
    %v1738 = vand.u32 %v1737, 4294901760
    %v1739 = vsub.f32 %v1737, %v1738
    %v1740 = vand.u32 %v1739, 4294901760
    %1741 = vmatprep.subr.mxu0 %v1740
    %v1742 = vand.u32 %v66, 4294901760
    %v1743 = vsub.f32 %v66, %v1742
    %v1744 = vand.u32 %v1743, 4294901760
    %v1745 = vsub.f32 %v1743, %v1744
    %v1746 = vand.u32 %v1745, 4294901760
    %1747 = vmatpush1.msra.mxu0 %v1746
    %v1748 = vand.u32 %v69, 4294901760
    %v1749 = vsub.f32 %v69, %v1748
    %v1750 = vand.u32 %v1749, 4294901760
    %v1751 = vsub.f32 %v1749, %v1750
    %v1752 = vand.u32 %v1751, 4294901760
    %1753 = vmatprep.subr.mxu0 %v1752
    %v1754 = vand.u32 %v68, 4294901760
    %v1755 = vsub.f32 %v68, %v1754
    %v1756 = vand.u32 %v1755, 4294901760
    %v1757 = vsub.f32 %v1755, %v1756
    %v1758 = vand.u32 %v1757, 4294901760
    %1759 = vmatpush1.msra.mxu0 %v1758
    %v1760 = vand.u32 %v71, 4294901760
    %v1761 = vsub.f32 %v71, %v1760
    %v1762 = vand.u32 %v1761, 4294901760
    %v1763 = vsub.f32 %v1761, %v1762
    %v1764 = vand.u32 %v1763, 4294901760
    %1765 = vmatprep.subr.mxu0 %v1764
    %v1766 = vand.u32 %v70, 4294901760
    %v1767 = vsub.f32 %v70, %v1766
    %v1768 = vand.u32 %v1767, 4294901760
    %v1769 = vsub.f32 %v1767, %v1768
    %v1770 = vand.u32 %v1769, 4294901760
    %1771 = vmatpush1.msra.mxu0 %v1770
    %v1772 = vand.u32 %v73, 4294901760
    %v1773 = vsub.f32 %v73, %v1772
    %v1774 = vand.u32 %v1773, 4294901760
    %v1775 = vsub.f32 %v1773, %v1774
    %v1776 = vand.u32 %v1775, 4294901760
    %1777 = vmatprep.subr.mxu0 %v1776
    %v1778 = vand.u32 %v72, 4294901760
    %v1779 = vsub.f32 %v72, %v1778
    %v1780 = vand.u32 %v1779, 4294901760
    %v1781 = vsub.f32 %v1779, %v1780
    %v1782 = vand.u32 %v1781, 4294901760
    %1783 = vmatpush1.msra.mxu0 %v1782
    %v1784 = vand.u32 %v75, 4294901760
    %v1785 = vsub.f32 %v75, %v1784
    %v1786 = vand.u32 %v1785, 4294901760
    %v1787 = vsub.f32 %v1785, %v1786
    %v1788 = vand.u32 %v1787, 4294901760
    %1789 = vmatprep.subr.mxu0 %v1788
    %v1790 = vand.u32 %v74, 4294901760
    %v1791 = vsub.f32 %v74, %v1790
    %v1792 = vand.u32 %v1791, 4294901760
    %v1793 = vsub.f32 %v1791, %v1792
    %v1794 = vand.u32 %v1793, 4294901760
    %1795 = vmatpush1.msra.mxu0 %v1794
    %v1796 = vand.u32 %v77, 4294901760
    %v1797 = vsub.f32 %v77, %v1796
    %v1798 = vand.u32 %v1797, 4294901760
    %v1799 = vsub.f32 %v1797, %v1798
    %v1800 = vand.u32 %v1799, 4294901760
    %1801 = vmatprep.subr.mxu0 %v1800
    %v1802 = vand.u32 %v76, 4294901760
    %v1803 = vsub.f32 %v76, %v1802
    %v1804 = vand.u32 %v1803, 4294901760
    %v1805 = vsub.f32 %v1803, %v1804
    %v1806 = vand.u32 %v1805, 4294901760
    %1807 = vmatpush1.msra.mxu0 %v1806
    %v1808 = vand.u32 %v79, 4294901760
    %v1809 = vsub.f32 %v79, %v1808
    %v1810 = vand.u32 %v1809, 4294901760
    %v1811 = vsub.f32 %v1809, %v1810
    %v1812 = vand.u32 %v1811, 4294901760
    %1813 = vmatprep.subr.mxu0 %v1812
    %v1814 = vand.u32 %v78, 4294901760
    %v1815 = vsub.f32 %v78, %v1814
    %v1816 = vand.u32 %v1815, 4294901760
    %v1817 = vsub.f32 %v1815, %v1816
    %v1818 = vand.u32 %v1817, 4294901760
    %1819 = vmatpush1.msra.mxu0 %v1818
    %v1820 = vand.u32 %v81, 4294901760
    %v1821 = vsub.f32 %v81, %v1820
    %v1822 = vand.u32 %v1821, 4294901760
    %v1823 = vsub.f32 %v1821, %v1822
    %v1824 = vand.u32 %v1823, 4294901760
    %1825 = vmatprep.subr.mxu0 %v1824
    %v1826 = vand.u32 %v80, 4294901760
    %v1827 = vsub.f32 %v80, %v1826
    %v1828 = vand.u32 %v1827, 4294901760
    %v1829 = vsub.f32 %v1827, %v1828
    %v1830 = vand.u32 %v1829, 4294901760
    %1831 = vmatpush1.msra.mxu0 %v1830
    %v1832 = vand.u32 %v83, 4294901760
    %v1833 = vsub.f32 %v83, %v1832
    %v1834 = vand.u32 %v1833, 4294901760
    %v1835 = vsub.f32 %v1833, %v1834
    %v1836 = vand.u32 %v1835, 4294901760
    %1837 = vmatprep.subr.mxu0 %v1836
    %v1838 = vand.u32 %v82, 4294901760
    %v1839 = vsub.f32 %v82, %v1838
    %v1840 = vand.u32 %v1839, 4294901760
    %v1841 = vsub.f32 %v1839, %v1840
    %v1842 = vand.u32 %v1841, 4294901760
    %1843 = vmatpush1.msra.mxu0 %v1842
    %v1844 = vand.u32 %v85, 4294901760
    %v1845 = vsub.f32 %v85, %v1844
    %v1846 = vand.u32 %v1845, 4294901760
    %v1847 = vsub.f32 %v1845, %v1846
    %v1848 = vand.u32 %v1847, 4294901760
    %1849 = vmatprep.subr.mxu0 %v1848
    %v1850 = vand.u32 %v84, 4294901760
    %v1851 = vsub.f32 %v84, %v1850
    %v1852 = vand.u32 %v1851, 4294901760
    %v1853 = vsub.f32 %v1851, %v1852
    %v1854 = vand.u32 %v1853, 4294901760
    %1855 = vmatpush1.msra.mxu0 %v1854
    %v1856 = vand.u32 %v87, 4294901760
    %v1857 = vsub.f32 %v87, %v1856
    %v1858 = vand.u32 %v1857, 4294901760
    %v1859 = vsub.f32 %v1857, %v1858
    %v1860 = vand.u32 %v1859, 4294901760
    %1861 = vmatprep.subr.mxu0 %v1860
    %v1862 = vand.u32 %v86, 4294901760
    %v1863 = vsub.f32 %v86, %v1862
    %v1864 = vand.u32 %v1863, 4294901760
    %v1865 = vsub.f32 %v1863, %v1864
    %v1866 = vand.u32 %v1865, 4294901760
    %1867 = vmatpush1.msra.mxu0 %v1866
    %v1868 = vand.u32 %v89, 4294901760
    %v1869 = vsub.f32 %v89, %v1868
    %v1870 = vand.u32 %v1869, 4294901760
    %v1871 = vsub.f32 %v1869, %v1870
    %v1872 = vand.u32 %v1871, 4294901760
    %1873 = vmatprep.subr.mxu0 %v1872
    %v1874 = vand.u32 %v88, 4294901760
    %v1875 = vsub.f32 %v88, %v1874
    %v1876 = vand.u32 %v1875, 4294901760
    %v1877 = vsub.f32 %v1875, %v1876
    %v1878 = vand.u32 %v1877, 4294901760
    %1879 = vmatpush1.msra.mxu0 %v1878
    %v1880 = vand.u32 %v91, 4294901760
    %v1881 = vsub.f32 %v91, %v1880
    %v1882 = vand.u32 %v1881, 4294901760
    %v1883 = vsub.f32 %v1881, %v1882
    %v1884 = vand.u32 %v1883, 4294901760
    %1885 = vmatprep.subr.mxu0 %v1884
    %v1886 = vand.u32 %v90, 4294901760
    %v1887 = vsub.f32 %v90, %v1886
    %v1888 = vand.u32 %v1887, 4294901760
    %v1889 = vsub.f32 %v1887, %v1888
    %v1890 = vand.u32 %v1889, 4294901760
    %1891 = vmatpush1.msra.mxu0 %v1890
    %v1892 = vand.u32 %v93, 4294901760
    %v1893 = vsub.f32 %v93, %v1892
    %v1894 = vand.u32 %v1893, 4294901760
    %v1895 = vsub.f32 %v1893, %v1894
    %v1896 = vand.u32 %v1895, 4294901760
    %1897 = vmatprep.subr.mxu0 %v1896
    %v1898 = vand.u32 %v92, 4294901760
    %v1899 = vsub.f32 %v92, %v1898
    %v1900 = vand.u32 %v1899, 4294901760
    %v1901 = vsub.f32 %v1899, %v1900
    %v1902 = vand.u32 %v1901, 4294901760
    %1903 = vmatpush1.msra.mxu0 %v1902
    %v1904 = vand.u32 %v95, 4294901760
    %v1905 = vsub.f32 %v95, %v1904
    %v1906 = vand.u32 %v1905, 4294901760
    %v1907 = vsub.f32 %v1905, %v1906
    %v1908 = vand.u32 %v1907, 4294901760
    %1909 = vmatprep.subr.mxu0 %v1908
    %v1910 = vand.u32 %v94, 4294901760
    %v1911 = vsub.f32 %v94, %v1910
    %v1912 = vand.u32 %v1911, 4294901760
    %v1913 = vsub.f32 %v1911, %v1912
    %v1914 = vand.u32 %v1913, 4294901760
    %1915 = vmatpush1.msra.mxu0 %v1914
    %v1916 = vand.u32 %v97, 4294901760
    %v1917 = vsub.f32 %v97, %v1916
    %v1918 = vand.u32 %v1917, 4294901760
    %v1919 = vsub.f32 %v1917, %v1918
    %v1920 = vand.u32 %v1919, 4294901760
    %1921 = vmatprep.subr.mxu0 %v1920
    %v1922 = vand.u32 %v96, 4294901760
    %v1923 = vsub.f32 %v96, %v1922
    %v1924 = vand.u32 %v1923, 4294901760
    %v1925 = vsub.f32 %v1923, %v1924
    %v1926 = vand.u32 %v1925, 4294901760
    %1927 = vmatpush1.msra.mxu0 %v1926
    %v1928 = vand.u32 %v99, 4294901760
    %v1929 = vsub.f32 %v99, %v1928
    %v1930 = vand.u32 %v1929, 4294901760
    %v1931 = vsub.f32 %v1929, %v1930
    %v1932 = vand.u32 %v1931, 4294901760
    %1933 = vmatprep.subr.mxu0 %v1932
    %v1934 = vand.u32 %v98, 4294901760
    %v1935 = vsub.f32 %v98, %v1934
    %v1936 = vand.u32 %v1935, 4294901760
    %v1937 = vsub.f32 %v1935, %v1936
    %v1938 = vand.u32 %v1937, 4294901760
    %1939 = vmatpush1.msra.mxu0 %v1938
    %v1940 = vand.u32 %v101, 4294901760
    %v1941 = vsub.f32 %v101, %v1940
    %v1942 = vand.u32 %v1941, 4294901760
    %v1943 = vsub.f32 %v1941, %v1942
    %v1944 = vand.u32 %v1943, 4294901760
    %1945 = vmatprep.subr.mxu0 %v1944
    %v1946 = vand.u32 %v100, 4294901760
    %v1947 = vsub.f32 %v100, %v1946
    %v1948 = vand.u32 %v1947, 4294901760
    %v1949 = vsub.f32 %v1947, %v1948
    %v1950 = vand.u32 %v1949, 4294901760
    %1951 = vmatpush1.msra.mxu0 %v1950
    %v1952 = vand.u32 %v103, 4294901760
    %v1953 = vsub.f32 %v103, %v1952
    %v1954 = vand.u32 %v1953, 4294901760
    %v1955 = vsub.f32 %v1953, %v1954
    %v1956 = vand.u32 %v1955, 4294901760
    %1957 = vmatprep.subr.mxu0 %v1956
    %v1958 = vand.u32 %v102, 4294901760
    %v1959 = vsub.f32 %v102, %v1958
    %v1960 = vand.u32 %v1959, 4294901760
    %v1961 = vsub.f32 %v1959, %v1960
    %v1962 = vand.u32 %v1961, 4294901760
    %1963 = vmatpush1.msra.mxu0 %v1962
    %v1964 = vand.u32 %v105, 4294901760
    %v1965 = vsub.f32 %v105, %v1964
    %v1966 = vand.u32 %v1965, 4294901760
    %v1967 = vsub.f32 %v1965, %v1966
    %v1968 = vand.u32 %v1967, 4294901760
    %1969 = vmatprep.subr.mxu0 %v1968
    %v1970 = vand.u32 %v104, 4294901760
    %v1971 = vsub.f32 %v104, %v1970
    %v1972 = vand.u32 %v1971, 4294901760
    %v1973 = vsub.f32 %v1971, %v1972
    %v1974 = vand.u32 %v1973, 4294901760
    %1975 = vmatpush1.msra.mxu0 %v1974
    %v1976 = vand.u32 %v107, 4294901760
    %v1977 = vsub.f32 %v107, %v1976
    %v1978 = vand.u32 %v1977, 4294901760
    %v1979 = vsub.f32 %v1977, %v1978
    %v1980 = vand.u32 %v1979, 4294901760
    %1981 = vmatprep.subr.mxu0 %v1980
    %v1982 = vand.u32 %v106, 4294901760
    %v1983 = vsub.f32 %v106, %v1982
    %v1984 = vand.u32 %v1983, 4294901760
    %v1985 = vsub.f32 %v1983, %v1984
    %v1986 = vand.u32 %v1985, 4294901760
    %1987 = vmatpush1.msra.mxu0 %v1986
    %v1988 = vand.u32 %v109, 4294901760
    %v1989 = vsub.f32 %v109, %v1988
    %v1990 = vand.u32 %v1989, 4294901760
    %v1991 = vsub.f32 %v1989, %v1990
    %v1992 = vand.u32 %v1991, 4294901760
    %1993 = vmatprep.subr.mxu0 %v1992
    %v1994 = vand.u32 %v108, 4294901760
    %v1995 = vsub.f32 %v108, %v1994
    %v1996 = vand.u32 %v1995, 4294901760
    %v1997 = vsub.f32 %v1995, %v1996
    %v1998 = vand.u32 %v1997, 4294901760
    %1999 = vmatpush1.msra.mxu0 %v1998
    %v2000 = vand.u32 %v111, 4294901760
    %v2001 = vsub.f32 %v111, %v2000
    %v2002 = vand.u32 %v2001, 4294901760
    %v2003 = vsub.f32 %v2001, %v2002
    %v2004 = vand.u32 %v2003, 4294901760
    %2005 = vmatprep.subr.mxu0 %v2004
    %v2006 = vand.u32 %v110, 4294901760
    %v2007 = vsub.f32 %v110, %v2006
    %v2008 = vand.u32 %v2007, 4294901760
    %v2009 = vsub.f32 %v2007, %v2008
    %v2010 = vand.u32 %v2009, 4294901760
    %2011 = vmatpush1.msra.mxu0 %v2010
    %v2012 = vand.u32 %v1480, 4294901760
    %2013 = vmatprep.mubr.f32.mxu0 %v2012
    %v2014 = vand.u32 %v1479, 4294901760
    %2015 = vmatmul.mubr.f32.gmra.mrb[0].mxu0 %v2014
    %v2016 = vpop.f32.mrb[0].mxu0
    %v2017 = vadd.f32 %v1624, %v2016
    %v2018 = vpop.f32.mrb[0].mxu0
    %v2019 = vadd.f32 %v1626, %v2018
    %2020 = vdwg.mxu0
    %v2021 = vand.u32 %v49, 4294901760
    %v2022 = vsub.f32 %v49, %v2021
    %2023 = vmatprep.subr.mxu0 %v2022
    %v2024 = vand.u32 %v48, 4294901760
    %v2025 = vsub.f32 %v48, %v2024
    %2026 = vmatpush1.msra.mxu0 %v2025
    %v2027 = vand.u32 %v51, 4294901760
    %v2028 = vsub.f32 %v51, %v2027
    %2029 = vmatprep.subr.mxu0 %v2028
    %v2030 = vand.u32 %v50, 4294901760
    %v2031 = vsub.f32 %v50, %v2030
    %2032 = vmatpush1.msra.mxu0 %v2031
    %v2033 = vand.u32 %v53, 4294901760
    %v2034 = vsub.f32 %v53, %v2033
    %2035 = vmatprep.subr.mxu0 %v2034
    %v2036 = vand.u32 %v52, 4294901760
    %v2037 = vsub.f32 %v52, %v2036
    %2038 = vmatpush1.msra.mxu0 %v2037
    %v2039 = vand.u32 %v55, 4294901760
    %v2040 = vsub.f32 %v55, %v2039
    %2041 = vmatprep.subr.mxu0 %v2040
    %v2042 = vand.u32 %v54, 4294901760
    %v2043 = vsub.f32 %v54, %v2042
    %2044 = vmatpush1.msra.mxu0 %v2043
    %v2045 = vand.u32 %v57, 4294901760
    %v2046 = vsub.f32 %v57, %v2045
    %2047 = vmatprep.subr.mxu0 %v2046
    %v2048 = vand.u32 %v56, 4294901760
    %v2049 = vsub.f32 %v56, %v2048
    %2050 = vmatpush1.msra.mxu0 %v2049
    %v2051 = vand.u32 %v59, 4294901760
    %v2052 = vsub.f32 %v59, %v2051
    %2053 = vmatprep.subr.mxu0 %v2052
    %v2054 = vand.u32 %v58, 4294901760
    %v2055 = vsub.f32 %v58, %v2054
    %2056 = vmatpush1.msra.mxu0 %v2055
    %v2057 = vand.u32 %v61, 4294901760
    %v2058 = vsub.f32 %v61, %v2057
    %2059 = vmatprep.subr.mxu0 %v2058
    %v2060 = vand.u32 %v60, 4294901760
    %v2061 = vsub.f32 %v60, %v2060
    %2062 = vmatpush1.msra.mxu0 %v2061
    %v2063 = vand.u32 %v63, 4294901760
    %v2064 = vsub.f32 %v63, %v2063
    %2065 = vmatprep.subr.mxu0 %v2064
    %v2066 = vand.u32 %v62, 4294901760
    %v2067 = vsub.f32 %v62, %v2066
    %2068 = vmatpush1.msra.mxu0 %v2067
    %v2069 = vand.u32 %v65, 4294901760
    %v2070 = vsub.f32 %v65, %v2069
    %2071 = vmatprep.subr.mxu0 %v2070
    %v2072 = vand.u32 %v64, 4294901760
    %v2073 = vsub.f32 %v64, %v2072
    %2074 = vmatpush1.msra.mxu0 %v2073
    %v2075 = vand.u32 %v67, 4294901760
    %v2076 = vsub.f32 %v67, %v2075
    %2077 = vmatprep.subr.mxu0 %v2076
    %v2078 = vand.u32 %v66, 4294901760
    %v2079 = vsub.f32 %v66, %v2078
    %2080 = vmatpush1.msra.mxu0 %v2079
    %v2081 = vand.u32 %v69, 4294901760
    %v2082 = vsub.f32 %v69, %v2081
    %2083 = vmatprep.subr.mxu0 %v2082
    %v2084 = vand.u32 %v68, 4294901760
    %v2085 = vsub.f32 %v68, %v2084
    %2086 = vmatpush1.msra.mxu0 %v2085
    %v2087 = vand.u32 %v71, 4294901760
    %v2088 = vsub.f32 %v71, %v2087
    %2089 = vmatprep.subr.mxu0 %v2088
    %v2090 = vand.u32 %v70, 4294901760
    %v2091 = vsub.f32 %v70, %v2090
    %2092 = vmatpush1.msra.mxu0 %v2091
    %v2093 = vand.u32 %v73, 4294901760
    %v2094 = vsub.f32 %v73, %v2093
    %2095 = vmatprep.subr.mxu0 %v2094
    %v2096 = vand.u32 %v72, 4294901760
    %v2097 = vsub.f32 %v72, %v2096
    %2098 = vmatpush1.msra.mxu0 %v2097
    %v2099 = vand.u32 %v75, 4294901760
    %v2100 = vsub.f32 %v75, %v2099
    %2101 = vmatprep.subr.mxu0 %v2100
    %v2102 = vand.u32 %v74, 4294901760
    %v2103 = vsub.f32 %v74, %v2102
    %2104 = vmatpush1.msra.mxu0 %v2103
    %v2105 = vand.u32 %v77, 4294901760
    %v2106 = vsub.f32 %v77, %v2105
    %2107 = vmatprep.subr.mxu0 %v2106
    %v2108 = vand.u32 %v76, 4294901760
    %v2109 = vsub.f32 %v76, %v2108
    %2110 = vmatpush1.msra.mxu0 %v2109
    %v2111 = vand.u32 %v79, 4294901760
    %v2112 = vsub.f32 %v79, %v2111
    %2113 = vmatprep.subr.mxu0 %v2112
    %v2114 = vand.u32 %v78, 4294901760
    %v2115 = vsub.f32 %v78, %v2114
    %2116 = vmatpush1.msra.mxu0 %v2115
    %v2117 = vand.u32 %v81, 4294901760
    %v2118 = vsub.f32 %v81, %v2117
    %2119 = vmatprep.subr.mxu0 %v2118
    %v2120 = vand.u32 %v80, 4294901760
    %v2121 = vsub.f32 %v80, %v2120
    %2122 = vmatpush1.msra.mxu0 %v2121
    %v2123 = vand.u32 %v83, 4294901760
    %v2124 = vsub.f32 %v83, %v2123
    %2125 = vmatprep.subr.mxu0 %v2124
    %v2126 = vand.u32 %v82, 4294901760
    %v2127 = vsub.f32 %v82, %v2126
    %2128 = vmatpush1.msra.mxu0 %v2127
    %v2129 = vand.u32 %v85, 4294901760
    %v2130 = vsub.f32 %v85, %v2129
    %2131 = vmatprep.subr.mxu0 %v2130
    %v2132 = vand.u32 %v84, 4294901760
    %v2133 = vsub.f32 %v84, %v2132
    %2134 = vmatpush1.msra.mxu0 %v2133
    %v2135 = vand.u32 %v87, 4294901760
    %v2136 = vsub.f32 %v87, %v2135
    %2137 = vmatprep.subr.mxu0 %v2136
    %v2138 = vand.u32 %v86, 4294901760
    %v2139 = vsub.f32 %v86, %v2138
    %2140 = vmatpush1.msra.mxu0 %v2139
    %v2141 = vand.u32 %v89, 4294901760
    %v2142 = vsub.f32 %v89, %v2141
    %2143 = vmatprep.subr.mxu0 %v2142
    %v2144 = vand.u32 %v88, 4294901760
    %v2145 = vsub.f32 %v88, %v2144
    %2146 = vmatpush1.msra.mxu0 %v2145
    %v2147 = vand.u32 %v91, 4294901760
    %v2148 = vsub.f32 %v91, %v2147
    %2149 = vmatprep.subr.mxu0 %v2148
    %v2150 = vand.u32 %v90, 4294901760
    %v2151 = vsub.f32 %v90, %v2150
    %2152 = vmatpush1.msra.mxu0 %v2151
    %v2153 = vand.u32 %v93, 4294901760
    %v2154 = vsub.f32 %v93, %v2153
    %2155 = vmatprep.subr.mxu0 %v2154
    %v2156 = vand.u32 %v92, 4294901760
    %v2157 = vsub.f32 %v92, %v2156
    %2158 = vmatpush1.msra.mxu0 %v2157
    %v2159 = vand.u32 %v95, 4294901760
    %v2160 = vsub.f32 %v95, %v2159
    %2161 = vmatprep.subr.mxu0 %v2160
    %v2162 = vand.u32 %v94, 4294901760
    %v2163 = vsub.f32 %v94, %v2162
    %2164 = vmatpush1.msra.mxu0 %v2163
    %v2165 = vand.u32 %v97, 4294901760
    %v2166 = vsub.f32 %v97, %v2165
    %2167 = vmatprep.subr.mxu0 %v2166
    %v2168 = vand.u32 %v96, 4294901760
    %v2169 = vsub.f32 %v96, %v2168
    %2170 = vmatpush1.msra.mxu0 %v2169
    %v2171 = vand.u32 %v99, 4294901760
    %v2172 = vsub.f32 %v99, %v2171
    %2173 = vmatprep.subr.mxu0 %v2172
    %v2174 = vand.u32 %v98, 4294901760
    %v2175 = vsub.f32 %v98, %v2174
    %2176 = vmatpush1.msra.mxu0 %v2175
    %v2177 = vand.u32 %v101, 4294901760
    %v2178 = vsub.f32 %v101, %v2177
    %2179 = vmatprep.subr.mxu0 %v2178
    %v2180 = vand.u32 %v100, 4294901760
    %v2181 = vsub.f32 %v100, %v2180
    %2182 = vmatpush1.msra.mxu0 %v2181
    %v2183 = vand.u32 %v103, 4294901760
    %v2184 = vsub.f32 %v103, %v2183
    %2185 = vmatprep.subr.mxu0 %v2184
    %v2186 = vand.u32 %v102, 4294901760
    %v2187 = vsub.f32 %v102, %v2186
    %2188 = vmatpush1.msra.mxu0 %v2187
    %v2189 = vand.u32 %v105, 4294901760
    %v2190 = vsub.f32 %v105, %v2189
    %2191 = vmatprep.subr.mxu0 %v2190
    %v2192 = vand.u32 %v104, 4294901760
    %v2193 = vsub.f32 %v104, %v2192
    %2194 = vmatpush1.msra.mxu0 %v2193
    %v2195 = vand.u32 %v107, 4294901760
    %v2196 = vsub.f32 %v107, %v2195
    %2197 = vmatprep.subr.mxu0 %v2196
    %v2198 = vand.u32 %v106, 4294901760
    %v2199 = vsub.f32 %v106, %v2198
    %2200 = vmatpush1.msra.mxu0 %v2199
    %v2201 = vand.u32 %v109, 4294901760
    %v2202 = vsub.f32 %v109, %v2201
    %2203 = vmatprep.subr.mxu0 %v2202
    %v2204 = vand.u32 %v108, 4294901760
    %v2205 = vsub.f32 %v108, %v2204
    %2206 = vmatpush1.msra.mxu0 %v2205
    %v2207 = vand.u32 %v111, 4294901760
    %v2208 = vsub.f32 %v111, %v2207
    %2209 = vmatprep.subr.mxu0 %v2208
    %v2210 = vand.u32 %v110, 4294901760
    %v2211 = vsub.f32 %v110, %v2210
    %2212 = vmatpush1.msra.mxu0 %v2211
    %v2213 = vand.u32 %v1480, 4294901760
    %v2214 = vsub.f32 %v1480, %v2213
    %2215 = vmatprep.mubr.f32.mxu0 %v2214
    %v2216 = vand.u32 %v1479, 4294901760
    %v2217 = vsub.f32 %v1479, %v2216
    %2218 = vmatmul.mubr.f32.gmra.mrb[0].mxu0 %v2217
    %v2219 = vpop.f32.mrb[0].mxu0
    %v2220 = vadd.f32 %v2017, %v2219
    %v2221 = vpop.f32.mrb[0].mxu0
    %v2222 = vadd.f32 %v2019, %v2221
    %2223 = vdwg.mxu0
    %v2224 = vand.u32 %v49, 4294901760
    %2225 = vmatprep.subr.mxu0 %v2224
    %v2226 = vand.u32 %v48, 4294901760
    %2227 = vmatpush1.msra.mxu0 %v2226
    %v2228 = vand.u32 %v51, 4294901760
    %2229 = vmatprep.subr.mxu0 %v2228
    %v2230 = vand.u32 %v50, 4294901760
    %2231 = vmatpush1.msra.mxu0 %v2230
    %v2232 = vand.u32 %v53, 4294901760
    %2233 = vmatprep.subr.mxu0 %v2232
    %v2234 = vand.u32 %v52, 4294901760
    %2235 = vmatpush1.msra.mxu0 %v2234
    %v2236 = vand.u32 %v55, 4294901760
    %2237 = vmatprep.subr.mxu0 %v2236
    %v2238 = vand.u32 %v54, 4294901760
    %2239 = vmatpush1.msra.mxu0 %v2238
    %v2240 = vand.u32 %v57, 4294901760
    %2241 = vmatprep.subr.mxu0 %v2240
    %v2242 = vand.u32 %v56, 4294901760
    %2243 = vmatpush1.msra.mxu0 %v2242
    %v2244 = vand.u32 %v59, 4294901760
    %2245 = vmatprep.subr.mxu0 %v2244
    %v2246 = vand.u32 %v58, 4294901760
    %2247 = vmatpush1.msra.mxu0 %v2246
    %v2248 = vand.u32 %v61, 4294901760
    %2249 = vmatprep.subr.mxu0 %v2248
    %v2250 = vand.u32 %v60, 4294901760
    %2251 = vmatpush1.msra.mxu0 %v2250
    %v2252 = vand.u32 %v63, 4294901760
    %2253 = vmatprep.subr.mxu0 %v2252
    %v2254 = vand.u32 %v62, 4294901760
    %2255 = vmatpush1.msra.mxu0 %v2254
    %v2256 = vand.u32 %v65, 4294901760
    %2257 = vmatprep.subr.mxu0 %v2256
    %v2258 = vand.u32 %v64, 4294901760
    %2259 = vmatpush1.msra.mxu0 %v2258
    %v2260 = vand.u32 %v67, 4294901760
    %2261 = vmatprep.subr.mxu0 %v2260
    %v2262 = vand.u32 %v66, 4294901760
    %2263 = vmatpush1.msra.mxu0 %v2262
    %v2264 = vand.u32 %v69, 4294901760
    %2265 = vmatprep.subr.mxu0 %v2264
    %v2266 = vand.u32 %v68, 4294901760
    %2267 = vmatpush1.msra.mxu0 %v2266
    %v2268 = vand.u32 %v71, 4294901760
    %2269 = vmatprep.subr.mxu0 %v2268
    %v2270 = vand.u32 %v70, 4294901760
    %2271 = vmatpush1.msra.mxu0 %v2270
    %v2272 = vand.u32 %v73, 4294901760
    %2273 = vmatprep.subr.mxu0 %v2272
    %v2274 = vand.u32 %v72, 4294901760
    %2275 = vmatpush1.msra.mxu0 %v2274
    %v2276 = vand.u32 %v75, 4294901760
    %2277 = vmatprep.subr.mxu0 %v2276
    %v2278 = vand.u32 %v74, 4294901760
    %2279 = vmatpush1.msra.mxu0 %v2278
    %v2280 = vand.u32 %v77, 4294901760
    %2281 = vmatprep.subr.mxu0 %v2280
    %v2282 = vand.u32 %v76, 4294901760
    %2283 = vmatpush1.msra.mxu0 %v2282
    %v2284 = vand.u32 %v79, 4294901760
    %2285 = vmatprep.subr.mxu0 %v2284
    %v2286 = vand.u32 %v78, 4294901760
    %2287 = vmatpush1.msra.mxu0 %v2286
    %v2288 = vand.u32 %v81, 4294901760
    %2289 = vmatprep.subr.mxu0 %v2288
    %v2290 = vand.u32 %v80, 4294901760
    %2291 = vmatpush1.msra.mxu0 %v2290
    %v2292 = vand.u32 %v83, 4294901760
    %2293 = vmatprep.subr.mxu0 %v2292
    %v2294 = vand.u32 %v82, 4294901760
    %2295 = vmatpush1.msra.mxu0 %v2294
    %v2296 = vand.u32 %v85, 4294901760
    %2297 = vmatprep.subr.mxu0 %v2296
    %v2298 = vand.u32 %v84, 4294901760
    %2299 = vmatpush1.msra.mxu0 %v2298
    %v2300 = vand.u32 %v87, 4294901760
    %2301 = vmatprep.subr.mxu0 %v2300
    %v2302 = vand.u32 %v86, 4294901760
    %2303 = vmatpush1.msra.mxu0 %v2302
    %v2304 = vand.u32 %v89, 4294901760
    %2305 = vmatprep.subr.mxu0 %v2304
    %v2306 = vand.u32 %v88, 4294901760
    %2307 = vmatpush1.msra.mxu0 %v2306
    %v2308 = vand.u32 %v91, 4294901760
    %2309 = vmatprep.subr.mxu0 %v2308
    %v2310 = vand.u32 %v90, 4294901760
    %2311 = vmatpush1.msra.mxu0 %v2310
    %v2312 = vand.u32 %v93, 4294901760
    %2313 = vmatprep.subr.mxu0 %v2312
    %v2314 = vand.u32 %v92, 4294901760
    %2315 = vmatpush1.msra.mxu0 %v2314
    %v2316 = vand.u32 %v95, 4294901760
    %2317 = vmatprep.subr.mxu0 %v2316
    %v2318 = vand.u32 %v94, 4294901760
    %2319 = vmatpush1.msra.mxu0 %v2318
    %v2320 = vand.u32 %v97, 4294901760
    %2321 = vmatprep.subr.mxu0 %v2320
    %v2322 = vand.u32 %v96, 4294901760
    %2323 = vmatpush1.msra.mxu0 %v2322
    %v2324 = vand.u32 %v99, 4294901760
    %2325 = vmatprep.subr.mxu0 %v2324
    %v2326 = vand.u32 %v98, 4294901760
    %2327 = vmatpush1.msra.mxu0 %v2326
    %v2328 = vand.u32 %v101, 4294901760
    %2329 = vmatprep.subr.mxu0 %v2328
    %v2330 = vand.u32 %v100, 4294901760
    %2331 = vmatpush1.msra.mxu0 %v2330
    %v2332 = vand.u32 %v103, 4294901760
    %2333 = vmatprep.subr.mxu0 %v2332
    %v2334 = vand.u32 %v102, 4294901760
    %2335 = vmatpush1.msra.mxu0 %v2334
    %v2336 = vand.u32 %v105, 4294901760
    %2337 = vmatprep.subr.mxu0 %v2336
    %v2338 = vand.u32 %v104, 4294901760
    %2339 = vmatpush1.msra.mxu0 %v2338
    %v2340 = vand.u32 %v107, 4294901760
    %2341 = vmatprep.subr.mxu0 %v2340
    %v2342 = vand.u32 %v106, 4294901760
    %2343 = vmatpush1.msra.mxu0 %v2342
    %v2344 = vand.u32 %v109, 4294901760
    %2345 = vmatprep.subr.mxu0 %v2344
    %v2346 = vand.u32 %v108, 4294901760
    %2347 = vmatpush1.msra.mxu0 %v2346
    %v2348 = vand.u32 %v111, 4294901760
    %2349 = vmatprep.subr.mxu0 %v2348
    %v2350 = vand.u32 %v110, 4294901760
    %2351 = vmatpush1.msra.mxu0 %v2350
    %v2352 = vand.u32 %v1480, 4294901760
    %v2353 = vsub.f32 %v1480, %v2352
    %v2354 = vand.u32 %v2353, 4294901760
    %2355 = vmatprep.mubr.f32.mxu0 %v2354
    %v2356 = vand.u32 %v1479, 4294901760
    %v2357 = vsub.f32 %v1479, %v2356
    %v2358 = vand.u32 %v2357, 4294901760
    %2359 = vmatmul.mubr.f32.gmra.mrb[0].mxu0 %v2358
    %v2360 = vpop.f32.mrb[0].mxu0
    %v2361 = vadd.f32 %v2220, %v2360
    %v2362 = vpop.f32.mrb[0].mxu0
    %v2363 = vadd.f32 %v2222, %v2362
    %2364 = vdwg.mxu0
    %v2365 = vand.u32 %v49, 4294901760
    %v2366 = vsub.f32 %v49, %v2365
    %v2367 = vand.u32 %v2366, 4294901760
    %2368 = vmatprep.subr.mxu0 %v2367
    %v2369 = vand.u32 %v48, 4294901760
    %v2370 = vsub.f32 %v48, %v2369
    %v2371 = vand.u32 %v2370, 4294901760
    %2372 = vmatpush1.msra.mxu0 %v2371
    %v2373 = vand.u32 %v51, 4294901760
    %v2374 = vsub.f32 %v51, %v2373
    %v2375 = vand.u32 %v2374, 4294901760
    %2376 = vmatprep.subr.mxu0 %v2375
    %v2377 = vand.u32 %v50, 4294901760
    %v2378 = vsub.f32 %v50, %v2377
    %v2379 = vand.u32 %v2378, 4294901760
    %2380 = vmatpush1.msra.mxu0 %v2379
    %v2381 = vand.u32 %v53, 4294901760
    %v2382 = vsub.f32 %v53, %v2381
    %v2383 = vand.u32 %v2382, 4294901760
    %2384 = vmatprep.subr.mxu0 %v2383
    %v2385 = vand.u32 %v52, 4294901760
    %v2386 = vsub.f32 %v52, %v2385
    %v2387 = vand.u32 %v2386, 4294901760
    %2388 = vmatpush1.msra.mxu0 %v2387
    %v2389 = vand.u32 %v55, 4294901760
    %v2390 = vsub.f32 %v55, %v2389
    %v2391 = vand.u32 %v2390, 4294901760
    %2392 = vmatprep.subr.mxu0 %v2391
    %v2393 = vand.u32 %v54, 4294901760
    %v2394 = vsub.f32 %v54, %v2393
    %v2395 = vand.u32 %v2394, 4294901760
    %2396 = vmatpush1.msra.mxu0 %v2395
    %v2397 = vand.u32 %v57, 4294901760
    %v2398 = vsub.f32 %v57, %v2397
    %v2399 = vand.u32 %v2398, 4294901760
    %2400 = vmatprep.subr.mxu0 %v2399
    %v2401 = vand.u32 %v56, 4294901760
    %v2402 = vsub.f32 %v56, %v2401
    %v2403 = vand.u32 %v2402, 4294901760
    %2404 = vmatpush1.msra.mxu0 %v2403
    %v2405 = vand.u32 %v59, 4294901760
    %v2406 = vsub.f32 %v59, %v2405
    %v2407 = vand.u32 %v2406, 4294901760
    %2408 = vmatprep.subr.mxu0 %v2407
    %v2409 = vand.u32 %v58, 4294901760
    %v2410 = vsub.f32 %v58, %v2409
    %v2411 = vand.u32 %v2410, 4294901760
    %2412 = vmatpush1.msra.mxu0 %v2411
    %v2413 = vand.u32 %v61, 4294901760
    %v2414 = vsub.f32 %v61, %v2413
    %v2415 = vand.u32 %v2414, 4294901760
    %2416 = vmatprep.subr.mxu0 %v2415
    %v2417 = vand.u32 %v60, 4294901760
    %v2418 = vsub.f32 %v60, %v2417
    %v2419 = vand.u32 %v2418, 4294901760
    %2420 = vmatpush1.msra.mxu0 %v2419
    %v2421 = vand.u32 %v63, 4294901760
    %v2422 = vsub.f32 %v63, %v2421
    %v2423 = vand.u32 %v2422, 4294901760
    %2424 = vmatprep.subr.mxu0 %v2423
    %v2425 = vand.u32 %v62, 4294901760
    %v2426 = vsub.f32 %v62, %v2425
    %v2427 = vand.u32 %v2426, 4294901760
    %2428 = vmatpush1.msra.mxu0 %v2427
    %v2429 = vand.u32 %v65, 4294901760
    %v2430 = vsub.f32 %v65, %v2429
    %v2431 = vand.u32 %v2430, 4294901760
    %2432 = vmatprep.subr.mxu0 %v2431
    %v2433 = vand.u32 %v64, 4294901760
    %v2434 = vsub.f32 %v64, %v2433
    %v2435 = vand.u32 %v2434, 4294901760
    %2436 = vmatpush1.msra.mxu0 %v2435
    %v2437 = vand.u32 %v67, 4294901760
    %v2438 = vsub.f32 %v67, %v2437
    %v2439 = vand.u32 %v2438, 4294901760
    %2440 = vmatprep.subr.mxu0 %v2439
    %v2441 = vand.u32 %v66, 4294901760
    %v2442 = vsub.f32 %v66, %v2441
    %v2443 = vand.u32 %v2442, 4294901760
    %2444 = vmatpush1.msra.mxu0 %v2443
    %v2445 = vand.u32 %v69, 4294901760
    %v2446 = vsub.f32 %v69, %v2445
    %v2447 = vand.u32 %v2446, 4294901760
    %2448 = vmatprep.subr.mxu0 %v2447
    %v2449 = vand.u32 %v68, 4294901760
    %v2450 = vsub.f32 %v68, %v2449
    %v2451 = vand.u32 %v2450, 4294901760
    %2452 = vmatpush1.msra.mxu0 %v2451
    %v2453 = vand.u32 %v71, 4294901760
    %v2454 = vsub.f32 %v71, %v2453
    %v2455 = vand.u32 %v2454, 4294901760
    %2456 = vmatprep.subr.mxu0 %v2455
    %v2457 = vand.u32 %v70, 4294901760
    %v2458 = vsub.f32 %v70, %v2457
    %v2459 = vand.u32 %v2458, 4294901760
    %2460 = vmatpush1.msra.mxu0 %v2459
    %v2461 = vand.u32 %v73, 4294901760
    %v2462 = vsub.f32 %v73, %v2461
    %v2463 = vand.u32 %v2462, 4294901760
    %2464 = vmatprep.subr.mxu0 %v2463
    %v2465 = vand.u32 %v72, 4294901760
    %v2466 = vsub.f32 %v72, %v2465
    %v2467 = vand.u32 %v2466, 4294901760
    %2468 = vmatpush1.msra.mxu0 %v2467
    %v2469 = vand.u32 %v75, 4294901760
    %v2470 = vsub.f32 %v75, %v2469
    %v2471 = vand.u32 %v2470, 4294901760
    %2472 = vmatprep.subr.mxu0 %v2471
    %v2473 = vand.u32 %v74, 4294901760
    %v2474 = vsub.f32 %v74, %v2473
    %v2475 = vand.u32 %v2474, 4294901760
    %2476 = vmatpush1.msra.mxu0 %v2475
    %v2477 = vand.u32 %v77, 4294901760
    %v2478 = vsub.f32 %v77, %v2477
    %v2479 = vand.u32 %v2478, 4294901760
    %2480 = vmatprep.subr.mxu0 %v2479
    %v2481 = vand.u32 %v76, 4294901760
    %v2482 = vsub.f32 %v76, %v2481
    %v2483 = vand.u32 %v2482, 4294901760
    %2484 = vmatpush1.msra.mxu0 %v2483
    %v2485 = vand.u32 %v79, 4294901760
    %v2486 = vsub.f32 %v79, %v2485
    %v2487 = vand.u32 %v2486, 4294901760
    %2488 = vmatprep.subr.mxu0 %v2487
    %v2489 = vand.u32 %v78, 4294901760
    %v2490 = vsub.f32 %v78, %v2489
    %v2491 = vand.u32 %v2490, 4294901760
    %2492 = vmatpush1.msra.mxu0 %v2491
    %v2493 = vand.u32 %v81, 4294901760
    %v2494 = vsub.f32 %v81, %v2493
    %v2495 = vand.u32 %v2494, 4294901760
    %2496 = vmatprep.subr.mxu0 %v2495
    %v2497 = vand.u32 %v80, 4294901760
    %v2498 = vsub.f32 %v80, %v2497
    %v2499 = vand.u32 %v2498, 4294901760
    %2500 = vmatpush1.msra.mxu0 %v2499
    %v2501 = vand.u32 %v83, 4294901760
    %v2502 = vsub.f32 %v83, %v2501
    %v2503 = vand.u32 %v2502, 4294901760
    %2504 = vmatprep.subr.mxu0 %v2503
    %v2505 = vand.u32 %v82, 4294901760
    %v2506 = vsub.f32 %v82, %v2505
    %v2507 = vand.u32 %v2506, 4294901760
    %2508 = vmatpush1.msra.mxu0 %v2507
    %v2509 = vand.u32 %v85, 4294901760
    %v2510 = vsub.f32 %v85, %v2509
    %v2511 = vand.u32 %v2510, 4294901760
    %2512 = vmatprep.subr.mxu0 %v2511
    %v2513 = vand.u32 %v84, 4294901760
    %v2514 = vsub.f32 %v84, %v2513
    %v2515 = vand.u32 %v2514, 4294901760
    %2516 = vmatpush1.msra.mxu0 %v2515
    %v2517 = vand.u32 %v87, 4294901760
    %v2518 = vsub.f32 %v87, %v2517
    %v2519 = vand.u32 %v2518, 4294901760
    %2520 = vmatprep.subr.mxu0 %v2519
    %v2521 = vand.u32 %v86, 4294901760
    %v2522 = vsub.f32 %v86, %v2521
    %v2523 = vand.u32 %v2522, 4294901760
    %2524 = vmatpush1.msra.mxu0 %v2523
    %v2525 = vand.u32 %v89, 4294901760
    %v2526 = vsub.f32 %v89, %v2525
    %v2527 = vand.u32 %v2526, 4294901760
    %2528 = vmatprep.subr.mxu0 %v2527
    %v2529 = vand.u32 %v88, 4294901760
    %v2530 = vsub.f32 %v88, %v2529
    %v2531 = vand.u32 %v2530, 4294901760
    %2532 = vmatpush1.msra.mxu0 %v2531
    %v2533 = vand.u32 %v91, 4294901760
    %v2534 = vsub.f32 %v91, %v2533
    %v2535 = vand.u32 %v2534, 4294901760
    %2536 = vmatprep.subr.mxu0 %v2535
    %v2537 = vand.u32 %v90, 4294901760
    %v2538 = vsub.f32 %v90, %v2537
    %v2539 = vand.u32 %v2538, 4294901760
    %2540 = vmatpush1.msra.mxu0 %v2539
    %v2541 = vand.u32 %v93, 4294901760
    %v2542 = vsub.f32 %v93, %v2541
    %v2543 = vand.u32 %v2542, 4294901760
    %2544 = vmatprep.subr.mxu0 %v2543
    %v2545 = vand.u32 %v92, 4294901760
    %v2546 = vsub.f32 %v92, %v2545
    %v2547 = vand.u32 %v2546, 4294901760
    %2548 = vmatpush1.msra.mxu0 %v2547
    %v2549 = vand.u32 %v95, 4294901760
    %v2550 = vsub.f32 %v95, %v2549
    %v2551 = vand.u32 %v2550, 4294901760
    %2552 = vmatprep.subr.mxu0 %v2551
    %v2553 = vand.u32 %v94, 4294901760
    %v2554 = vsub.f32 %v94, %v2553
    %v2555 = vand.u32 %v2554, 4294901760
    %2556 = vmatpush1.msra.mxu0 %v2555
    %v2557 = vand.u32 %v97, 4294901760
    %v2558 = vsub.f32 %v97, %v2557
    %v2559 = vand.u32 %v2558, 4294901760
    %2560 = vmatprep.subr.mxu0 %v2559
    %v2561 = vand.u32 %v96, 4294901760
    %v2562 = vsub.f32 %v96, %v2561
    %v2563 = vand.u32 %v2562, 4294901760
    %2564 = vmatpush1.msra.mxu0 %v2563
    %v2565 = vand.u32 %v99, 4294901760
    %v2566 = vsub.f32 %v99, %v2565
    %v2567 = vand.u32 %v2566, 4294901760
    %2568 = vmatprep.subr.mxu0 %v2567
    %v2569 = vand.u32 %v98, 4294901760
    %v2570 = vsub.f32 %v98, %v2569
    %v2571 = vand.u32 %v2570, 4294901760
    %2572 = vmatpush1.msra.mxu0 %v2571
    %v2573 = vand.u32 %v101, 4294901760
    %v2574 = vsub.f32 %v101, %v2573
    %v2575 = vand.u32 %v2574, 4294901760
    %2576 = vmatprep.subr.mxu0 %v2575
    %v2577 = vand.u32 %v100, 4294901760
    %v2578 = vsub.f32 %v100, %v2577
    %v2579 = vand.u32 %v2578, 4294901760
    %2580 = vmatpush1.msra.mxu0 %v2579
    %v2581 = vand.u32 %v103, 4294901760
    %v2582 = vsub.f32 %v103, %v2581
    %v2583 = vand.u32 %v2582, 4294901760
    %2584 = vmatprep.subr.mxu0 %v2583
    %v2585 = vand.u32 %v102, 4294901760
    %v2586 = vsub.f32 %v102, %v2585
    %v2587 = vand.u32 %v2586, 4294901760
    %2588 = vmatpush1.msra.mxu0 %v2587
    %v2589 = vand.u32 %v105, 4294901760
    %v2590 = vsub.f32 %v105, %v2589
    %v2591 = vand.u32 %v2590, 4294901760
    %2592 = vmatprep.subr.mxu0 %v2591
    %v2593 = vand.u32 %v104, 4294901760
    %v2594 = vsub.f32 %v104, %v2593
    %v2595 = vand.u32 %v2594, 4294901760
    %2596 = vmatpush1.msra.mxu0 %v2595
    %v2597 = vand.u32 %v107, 4294901760
    %v2598 = vsub.f32 %v107, %v2597
    %v2599 = vand.u32 %v2598, 4294901760
    %2600 = vmatprep.subr.mxu0 %v2599
    %v2601 = vand.u32 %v106, 4294901760
    %v2602 = vsub.f32 %v106, %v2601
    %v2603 = vand.u32 %v2602, 4294901760
    %2604 = vmatpush1.msra.mxu0 %v2603
    %v2605 = vand.u32 %v109, 4294901760
    %v2606 = vsub.f32 %v109, %v2605
    %v2607 = vand.u32 %v2606, 4294901760
    %2608 = vmatprep.subr.mxu0 %v2607
    %v2609 = vand.u32 %v108, 4294901760
    %v2610 = vsub.f32 %v108, %v2609
    %v2611 = vand.u32 %v2610, 4294901760
    %2612 = vmatpush1.msra.mxu0 %v2611
    %v2613 = vand.u32 %v111, 4294901760
    %v2614 = vsub.f32 %v111, %v2613
    %v2615 = vand.u32 %v2614, 4294901760
    %2616 = vmatprep.subr.mxu0 %v2615
    %v2617 = vand.u32 %v110, 4294901760
    %v2618 = vsub.f32 %v110, %v2617
    %v2619 = vand.u32 %v2618, 4294901760
    %2620 = vmatpush1.msra.mxu0 %v2619
    %v2621 = vand.u32 %v1480, 4294901760
    %2622 = vmatprep.mubr.f32.mxu0 %v2621
    %v2623 = vand.u32 %v1479, 4294901760
    %2624 = vmatmul.mubr.f32.gmra.mrb[0].mxu0 %v2623
    %v2625 = vpop.f32.mrb[0].mxu0
    %v2626 = vadd.f32 %v2361, %v2625
    %v2627 = vpop.f32.mrb[0].mxu0
    %v2628 = vadd.f32 %v2363, %v2627
    %2629 = vdwg.mxu0
    %v2630 = vand.u32 %v49, 4294901760
    %2631 = vmatprep.subr.mxu0 %v2630
    %v2632 = vand.u32 %v48, 4294901760
    %2633 = vmatpush1.msra.mxu0 %v2632
    %v2634 = vand.u32 %v51, 4294901760
    %2635 = vmatprep.subr.mxu0 %v2634
    %v2636 = vand.u32 %v50, 4294901760
    %2637 = vmatpush1.msra.mxu0 %v2636
    %v2638 = vand.u32 %v53, 4294901760
    %2639 = vmatprep.subr.mxu0 %v2638
    %v2640 = vand.u32 %v52, 4294901760
    %2641 = vmatpush1.msra.mxu0 %v2640
    %v2642 = vand.u32 %v55, 4294901760
    %2643 = vmatprep.subr.mxu0 %v2642
    %v2644 = vand.u32 %v54, 4294901760
    %2645 = vmatpush1.msra.mxu0 %v2644
    %v2646 = vand.u32 %v57, 4294901760
    %2647 = vmatprep.subr.mxu0 %v2646
    %v2648 = vand.u32 %v56, 4294901760
    %2649 = vmatpush1.msra.mxu0 %v2648
    %v2650 = vand.u32 %v59, 4294901760
    %2651 = vmatprep.subr.mxu0 %v2650
    %v2652 = vand.u32 %v58, 4294901760
    %2653 = vmatpush1.msra.mxu0 %v2652
    %v2654 = vand.u32 %v61, 4294901760
    %2655 = vmatprep.subr.mxu0 %v2654
    %v2656 = vand.u32 %v60, 4294901760
    %2657 = vmatpush1.msra.mxu0 %v2656
    %v2658 = vand.u32 %v63, 4294901760
    %2659 = vmatprep.subr.mxu0 %v2658
    %v2660 = vand.u32 %v62, 4294901760
    %2661 = vmatpush1.msra.mxu0 %v2660
    %v2662 = vand.u32 %v65, 4294901760
    %2663 = vmatprep.subr.mxu0 %v2662
    %v2664 = vand.u32 %v64, 4294901760
    %2665 = vmatpush1.msra.mxu0 %v2664
    %v2666 = vand.u32 %v67, 4294901760
    %2667 = vmatprep.subr.mxu0 %v2666
    %v2668 = vand.u32 %v66, 4294901760
    %2669 = vmatpush1.msra.mxu0 %v2668
    %v2670 = vand.u32 %v69, 4294901760
    %2671 = vmatprep.subr.mxu0 %v2670
    %v2672 = vand.u32 %v68, 4294901760
    %2673 = vmatpush1.msra.mxu0 %v2672
    %v2674 = vand.u32 %v71, 4294901760
    %2675 = vmatprep.subr.mxu0 %v2674
    %v2676 = vand.u32 %v70, 4294901760
    %2677 = vmatpush1.msra.mxu0 %v2676
    %v2678 = vand.u32 %v73, 4294901760
    %2679 = vmatprep.subr.mxu0 %v2678
    %v2680 = vand.u32 %v72, 4294901760
    %2681 = vmatpush1.msra.mxu0 %v2680
    %v2682 = vand.u32 %v75, 4294901760
    %2683 = vmatprep.subr.mxu0 %v2682
    %v2684 = vand.u32 %v74, 4294901760
    %2685 = vmatpush1.msra.mxu0 %v2684
    %v2686 = vand.u32 %v77, 4294901760
    %2687 = vmatprep.subr.mxu0 %v2686
    %v2688 = vand.u32 %v76, 4294901760
    %2689 = vmatpush1.msra.mxu0 %v2688
    %v2690 = vand.u32 %v79, 4294901760
    %2691 = vmatprep.subr.mxu0 %v2690
    %v2692 = vand.u32 %v78, 4294901760
    %2693 = vmatpush1.msra.mxu0 %v2692
    %v2694 = vand.u32 %v81, 4294901760
    %2695 = vmatprep.subr.mxu0 %v2694
    %v2696 = vand.u32 %v80, 4294901760
    %2697 = vmatpush1.msra.mxu0 %v2696
    %v2698 = vand.u32 %v83, 4294901760
    %2699 = vmatprep.subr.mxu0 %v2698
    %v2700 = vand.u32 %v82, 4294901760
    %2701 = vmatpush1.msra.mxu0 %v2700
    %v2702 = vand.u32 %v85, 4294901760
    %2703 = vmatprep.subr.mxu0 %v2702
    %v2704 = vand.u32 %v84, 4294901760
    %2705 = vmatpush1.msra.mxu0 %v2704
    %v2706 = vand.u32 %v87, 4294901760
    %2707 = vmatprep.subr.mxu0 %v2706
    %v2708 = vand.u32 %v86, 4294901760
    %2709 = vmatpush1.msra.mxu0 %v2708
    %v2710 = vand.u32 %v89, 4294901760
    %2711 = vmatprep.subr.mxu0 %v2710
    %v2712 = vand.u32 %v88, 4294901760
    %2713 = vmatpush1.msra.mxu0 %v2712
    %v2714 = vand.u32 %v91, 4294901760
    %2715 = vmatprep.subr.mxu0 %v2714
    %v2716 = vand.u32 %v90, 4294901760
    %2717 = vmatpush1.msra.mxu0 %v2716
    %v2718 = vand.u32 %v93, 4294901760
    %2719 = vmatprep.subr.mxu0 %v2718
    %v2720 = vand.u32 %v92, 4294901760
    %2721 = vmatpush1.msra.mxu0 %v2720
    %v2722 = vand.u32 %v95, 4294901760
    %2723 = vmatprep.subr.mxu0 %v2722
    %v2724 = vand.u32 %v94, 4294901760
    %2725 = vmatpush1.msra.mxu0 %v2724
    %v2726 = vand.u32 %v97, 4294901760
    %2727 = vmatprep.subr.mxu0 %v2726
    %v2728 = vand.u32 %v96, 4294901760
    %2729 = vmatpush1.msra.mxu0 %v2728
    %v2730 = vand.u32 %v99, 4294901760
    %2731 = vmatprep.subr.mxu0 %v2730
    %v2732 = vand.u32 %v98, 4294901760
    %2733 = vmatpush1.msra.mxu0 %v2732
    %v2734 = vand.u32 %v101, 4294901760
    %2735 = vmatprep.subr.mxu0 %v2734
    %v2736 = vand.u32 %v100, 4294901760
    %2737 = vmatpush1.msra.mxu0 %v2736
    %v2738 = vand.u32 %v103, 4294901760
    %2739 = vmatprep.subr.mxu0 %v2738
    %v2740 = vand.u32 %v102, 4294901760
    %2741 = vmatpush1.msra.mxu0 %v2740
    %v2742 = vand.u32 %v105, 4294901760
    %2743 = vmatprep.subr.mxu0 %v2742
    %v2744 = vand.u32 %v104, 4294901760
    %2745 = vmatpush1.msra.mxu0 %v2744
    %v2746 = vand.u32 %v107, 4294901760
    %2747 = vmatprep.subr.mxu0 %v2746
    %v2748 = vand.u32 %v106, 4294901760
    %2749 = vmatpush1.msra.mxu0 %v2748
    %v2750 = vand.u32 %v109, 4294901760
    %2751 = vmatprep.subr.mxu0 %v2750
    %v2752 = vand.u32 %v108, 4294901760
    %2753 = vmatpush1.msra.mxu0 %v2752
    %v2754 = vand.u32 %v111, 4294901760
    %2755 = vmatprep.subr.mxu0 %v2754
    %v2756 = vand.u32 %v110, 4294901760
    %2757 = vmatpush1.msra.mxu0 %v2756
    %v2758 = vand.u32 %v1480, 4294901760
    %2759 = vmatprep.mubr.f32.mxu0 %v2758
    %v2760 = vand.u32 %v1479, 4294901760
    %2761 = vmatmul.mubr.f32.gmra.mrb[0].mxu0 %v2760
    %v2762 = vpop.f32.mrb[0].mxu0
    %v2763 = vadd.f32 %v2626, %v2762
    %v2764 = vpop.f32.mrb[0].mxu0
    %v2765 = vadd.f32 %v2628, %v2764
    %2766 = vdwg.mxu0
    %v2767 = vxor.u32 %v2763, 2147483648
    %v2768 = vxor.u32 %v2765, 2147483648
    %v2769 = vmul.f32 %v2767, 1.442695
    %v2770 = vpow.pop %v2769
    %v2771 = vmul.f32 %v2768, 1.442695
    %v2772 = vpow.pop %v2771
    %v2773 = vadd.f32 %v2770, 1.0
    %v2774 = vadd.f32 %v2772, 1.0
    %v2775 = vrcp.pop %v2773
    %v2776 = vmul.f32 1.0, %v2775
    %v2777 = vrcp.pop %v2774
    %v2778 = vmul.f32 1.0, %v2777
    %v2781 = vcombine.low %v2776, %v2778
    %v2783 = vunpack.c.l.s4 1983009808
    %v2784 = vunpack.c.0.s8 %v2783
    %v2785 = vlaneseq
    %v2786 = vshrl.u32 %v2785, 7
    %v2787 = vsub.s32 %v2784, %v2786
    %v2788 = vrot.slane %v2781, %v2787
    %2790 = vst [vmem:[#allocation7] sm:$0xf] %v2788
    // Predicated region
    $region18: #{tpu_custom_call.1} parent=1 // pred_check
      _
    $region19: #{tpu_custom_call.1} parent=1 // pred_check_branch
      %2792 = sbr.rel (0) target = $region21
    $region20: #{tpu_custom_call.1} parent=1 // pred_region
      %s2794 = ssub.s32 64, 64
      %2795 = vsyncadd [#allocation4], %s2794
      %s2797 = sshll.u32 [#allocation7], 4
      %s2798 = int_to_ptr.vmem [resolvable:$true] %s2797
      %2800 = dma.vmem_to_hbm [thread:$0]  %s2798, 64, %s2, [#allocation4]
    $region21: #{tpu_custom_call.1} parent=1 // pred_fallthru
      _
    // Predicated region
    $region22: #{tpu_custom_call.1} parent=1 // pred_check
      _
    $region23: #{tpu_custom_call.1} parent=1 // pred_check_branch
      %2802 = sbr.rel (0) target = $region25
    $region24: #{tpu_custom_call.1} parent=1 // pred_region
      %2803 = dma.done [#allocation4], 64
    $region25: #{tpu_custom_call.1} parent=1 // pred_fallthru
      _
    %2804 = vsyncpa [#allocation3], 1
    %2805 = vsyncpa [#allocation6], 1
    %2806 = vsyncpa [#allocation4], 1

</llo_original>
